<compile_context>
chip_gen: v6e
topology: v6e:2x2x1
jax: 0.10.0
libtpu: 0.0.40
codegen_flags: <defaults>
</compile_context>

<pallas_src>
import jax
import jax.numpy as jnp
from jax.experimental import pallas as pl
from jax.experimental.pallas import tpu as pltpu


_OUT_W = 128  # lane-dense padded width of the final weight (VMEM-resident only)


def _round_up(x, m):
    return (x + m - 1) // m * m


def _leaky_relu(x, slope=0.2):
    return jnp.where(x > 0, x, slope * x)


def discriminator_kernel(x_ref, w1_ref, b1_ref, w2_ref, b2_ref, w3_ref, b3_ref,
                         out_ref):
    """Fused 3-layer MLP discriminator for one batch tile.

    x_ref  : [TB, F]        f32 flattened images (cast to bf16 on-chip)
    w1_ref : [F,   512]     bf16 (stored [in, out])
    b1_ref : [1,   512]     f32
    w2_ref : [512, 256]     bf16
    b2_ref : [1,   256]     f32
    w3_ref : [256, 128]     bf16 (columns 1..127 are zero padding)
    b3_ref : [1,   1]       f32
    out_ref: [TB,  1]       f32
    """
    x = x_ref[...].astype(jnp.bfloat16)

    h1 = jnp.dot(x, w1_ref[...], preferred_element_type=jnp.float32)
    h1 = _leaky_relu(h1 + b1_ref[...])

    h2 = jnp.dot(h1.astype(jnp.bfloat16), w2_ref[...],
                 preferred_element_type=jnp.float32)
    h2 = _leaky_relu(h2 + b2_ref[...])

    h3 = jnp.dot(h2.astype(jnp.bfloat16), w3_ref[...],
                 preferred_element_type=jnp.float32)
    logit = h3[:, 0:1] + b3_ref[...]

    out_ref[...] = jax.nn.sigmoid(logit)


def _pick_batch_tile(b, f, vmem_budget_bytes=30 * 1024 * 1024):
    """Pick the largest batch tile that (a) keeps >=2 grid steps whenever the
    batch allows it (v7x megacore) and (b) fits a conservative VMEM budget
    that is valid on all of v5e / v6e / v7x."""
    if b <= 8:
        return b if b < 8 else 8

    f_ln = _round_up(f, 128)  # Mosaic lane-pads the feature axis in VMEM
    # Resident weights + biases, counted 2x: Pallas double-buffers every
    # input by default, including blocks whose index never changes.
    w_bytes = 2 * ((f_ln * 512 + 512 * 256 + 256 * _OUT_W) * 2
                   + (512 + 256 + 1) * 4)

    # Cap so that grid has >= 2 steps -> batch axis shards across both
    # TensorCores on v7x; also cap at 1024 (per-step overhead already well
    # amortized there).
    cap = min(1024, _round_up(pl.cdiv(b, 2), 8))
    tb = min(cap, _round_up(b, 8))
    while tb > 8:
        act_bytes = (2 * tb * f_ln * 4        # double-buffered f32 x tile
                     + 2 * tb * 128 * 4       # double-buffered out tile (lane-padded)
                     + tb * f_ln * 2          # on-chip bf16 copy of x
                     + tb * (512 + 256) * 6   # h1/h2 in f32 + bf16
                     + tb * _OUT_W * 4)       # h3 f32
        if w_bytes + act_bytes <= vmem_budget_bytes:
            break
        tb = _round_up(tb // 2, 8)
    return max(tb, 8)


def discriminator_forward(img, params):
    """img: (B, C, H, W) float32; returns (B, 1) validity in f32."""
    b = img.shape[0]
    w1, b1, w2, b2, w3, b3 = params
    f = w1.shape[0]

    x = img.reshape(b, -1)                       # == img.view(img.size(0), -1)
    assert x.shape[1] == f, (x.shape, f)

    # Tiny one-time weight preprocessing (no passes over the image data):
    w1_bf = w1.astype(jnp.bfloat16)
    w2_bf = w2.astype(jnp.bfloat16)
    w3_bf = jnp.pad(w3, ((0, 0), (0, _OUT_W - w3.shape[1]))).astype(jnp.bfloat16)

    tb = _pick_batch_tile(b, f)
    grid = (pl.cdiv(b, tb),)                     # ragged last tile if tb ∤ b

    out = pl.pallas_call(
        discriminator_kernel,
        out_shape=jax.ShapeDtypeStruct((b, 1), jnp.float32),
        grid=grid,
        in_specs=[
            pl.BlockSpec((tb, f), lambda i: (i, 0)),        # x tile (streamed)
            pl.BlockSpec((f, 512), lambda i: (0, 0)),       # w1 (resident)
            pl.BlockSpec((1, 512), lambda i: (0, 0)),       # b1
            pl.BlockSpec((512, 256), lambda i: (0, 0)),     # w2
            pl.BlockSpec((1, 256), lambda i: (0, 0)),       # b2
            pl.BlockSpec((256, _OUT_W), lambda i: (0, 0)),  # w3 (lane-padded)
            pl.BlockSpec((1, 1), lambda i: (0, 0)),         # b3
        ],
        out_specs=pl.BlockSpec((tb, 1), lambda i: (i, 0)),
        compiler_params=pltpu.CompilerParams(
            dimension_semantics=("parallel",),
            vmem_limit_bytes=48 * 1024 * 1024),
    )(x, w1_bf, b1, w2_bf, b2, w3_bf, b3)

    return out


def init_params(key, in_features):
    """Mirrors PyTorch nn.Linear default init: U(-1/sqrt(fan_in), +1/sqrt(fan_in))."""
    dims = [(in_features, 512), (512, 256), (256, 1)]
    params = []
    for fan_in, fan_out in dims:
        kw, kb, key = jax.random.split(key, 3)
        bound = 1.0 / jnp.sqrt(jnp.float32(fan_in))
        # stored as [in, out] so the kernel computes x @ W directly
        w = jax.random.uniform(kw, (fan_in, fan_out), jnp.float32, -bound, bound)
        bias = jax.random.uniform(kb, (1, fan_out), jnp.float32, -bound, bound)
        params += [w, bias]
    return tuple(params)


def reference_forward(img, params):
    """Pure-JAX f32 reference for correctness checking."""
    x = img.reshape(img.shape[0], -1)
    w1, b1, w2, b2, w3, b3 = params
    h = _leaky_relu(x @ w1 + b1)
    h = _leaky_relu(h @ w2 + b2)
    return jax.nn.sigmoid(h @ w3 + b3)


if __name__ == "__main__":
    key = jax.random.PRNGKey(0)
    k_img, k_par = jax.random.split(key)

    # MNIST-like images: in_features = 784 (not a multiple of 128, so the
    # full-dim feature block path is exercised).  B = 20 exercises the
    # multi-step grid (>=2 steps for v7x) and the ragged last batch tile.
    B, C, H, W = 20, 1, 28, 28
    img = jax.random.normal(k_img, (B, C, H, W), dtype=jnp.float32)

    params = init_params(k_par, C * H * W)

    fwd = jax.jit(discriminator_forward)
    out = fwd(img, params)
    out = jax.block_until_ready(out)

    ref = reference_forward(img, params)
    assert out.shape == (B, 1), out.shape
    # bf16 matmul inputs (f32 accumulation) -> slightly looser tolerance vs
    # the pure-f32 reference.
    assert jnp.allclose(out, ref, atol=5e-2, rtol=5e-2), (out, ref)
    assert bool(jnp.all((out >= 0.0) & (out <= 1.0)))

    print("KERNEL_OK")
</pallas_src>

<mosaic_0001>
module attributes {stable_mosaic.version = 11 : i64} {
  func.func @discriminator_kernel(%arg0: i32, %arg1: memref<16x784xf32, #tpu.memory_space<vmem>>, %arg2: memref<784x512xbf16, #tpu.memory_space<vmem>>, %arg3: memref<1x512xf32, #tpu.memory_space<vmem>>, %arg4: memref<512x256xbf16, #tpu.memory_space<vmem>>, %arg5: memref<1x256xf32, #tpu.memory_space<vmem>>, %arg6: memref<256x128xbf16, #tpu.memory_space<vmem>>, %arg7: memref<1x1xf32, #tpu.memory_space<vmem>>, %arg8: memref<16x1xf32, #tpu.memory_space<vmem>>) attributes {dimension_semantics = [#tpu.dimension_semantics<parallel>], iteration_bounds = array<i64: 2>, scalar_prefetch = 0 : i64, scratch_operands = 0 : i64, tpu.core_type = #tpu.core_type<tc>, window_params = [{transform_indices = @transform_0, window_bounds = array<i64: 16, 784>}, {pipeline_mode = #tpu.pipeline_mode<synchronous>, transform_indices = @transform_1, window_bounds = array<i64: 784, 512>}, {pipeline_mode = #tpu.pipeline_mode<synchronous>, transform_indices = @transform_2, window_bounds = array<i64: 1, 512>}, {pipeline_mode = #tpu.pipeline_mode<synchronous>, transform_indices = @transform_3, window_bounds = array<i64: 512, 256>}, {pipeline_mode = #tpu.pipeline_mode<synchronous>, transform_indices = @transform_4, window_bounds = array<i64: 1, 256>}, {pipeline_mode = #tpu.pipeline_mode<synchronous>, transform_indices = @transform_5, window_bounds = array<i64: 256, 128>}, {pipeline_mode = #tpu.pipeline_mode<synchronous>, transform_indices = @transform_6, window_bounds = array<i64: 1, 1>}, {transform_indices = @transform_7, window_bounds = array<i64: 16, 1>}]} {
    %c0 = arith.constant 0 : index
    %c0_0 = arith.constant 0 : index
    %0 = vector.load %arg1[%c0, %c0_0] : memref<16x784xf32, #tpu.memory_space<vmem>>, vector<16x784xf32>
    %1 = arith.truncf %0 : vector<16x784xf32> to vector<16x784xbf16>
    %c0_1 = arith.constant 0 : index
    %c0_2 = arith.constant 0 : index
    %2 = vector.load %arg2[%c0_1, %c0_2] : memref<784x512xbf16, #tpu.memory_space<vmem>>, vector<784x512xbf16>
    %cst = arith.constant dense<0.000000e+00> : vector<16x512xf32>
    %3 = tpu.matmul %1, %2, %cst {dimension_numbers = #tpu.dot_dimension_numbers<[1], [0], [0], [1], [0, 0, 1, 1], [], []>} : vector<16x784xbf16>, vector<784x512xbf16>, vector<16x512xf32> -> vector<16x512xf32>
    %c0_3 = arith.constant 0 : index
    %c0_4 = arith.constant 0 : index
    %4 = vector.load %arg3[%c0_3, %c0_4] : memref<1x512xf32, #tpu.memory_space<vmem>>, vector<1x512xf32>
    %5 = vector.broadcast %4 : vector<1x512xf32> to vector<16x512xf32>
    %6 = arith.addf %3, %5 : vector<16x512xf32>
    %cst_5 = arith.constant 0.000000e+00 : f32
    %7 = vector.broadcast %cst_5 : f32 to vector<16x512xf32>
    %8 = arith.cmpf ogt, %6, %7 : vector<16x512xf32>
    %cst_6 = arith.constant 2.000000e-01 : f32
    %9 = vector.broadcast %cst_6 : f32 to vector<16x512xf32>
    %10 = arith.mulf %9, %6 : vector<16x512xf32>
    %11 = arith.select %8, %6, %10 : vector<16x512xi1>, vector<16x512xf32>
    %12 = arith.truncf %11 : vector<16x512xf32> to vector<16x512xbf16>
    %c0_7 = arith.constant 0 : index
    %c0_8 = arith.constant 0 : index
    %13 = vector.load %arg4[%c0_7, %c0_8] : memref<512x256xbf16, #tpu.memory_space<vmem>>, vector<512x256xbf16>
    %cst_9 = arith.constant dense<0.000000e+00> : vector<16x256xf32>
    %14 = tpu.matmul %12, %13, %cst_9 {dimension_numbers = #tpu.dot_dimension_numbers<[1], [0], [0], [1], [0, 0, 1, 1], [], []>} : vector<16x512xbf16>, vector<512x256xbf16>, vector<16x256xf32> -> vector<16x256xf32>
    %c0_10 = arith.constant 0 : index
    %c0_11 = arith.constant 0 : index
    %15 = vector.load %arg5[%c0_10, %c0_11] : memref<1x256xf32, #tpu.memory_space<vmem>>, vector<1x256xf32>
    %16 = vector.broadcast %15 : vector<1x256xf32> to vector<16x256xf32>
    %17 = arith.addf %14, %16 : vector<16x256xf32>
    %cst_12 = arith.constant 0.000000e+00 : f32
    %18 = vector.broadcast %cst_12 : f32 to vector<16x256xf32>
    %19 = arith.cmpf ogt, %17, %18 : vector<16x256xf32>
    %cst_13 = arith.constant 2.000000e-01 : f32
    %20 = vector.broadcast %cst_13 : f32 to vector<16x256xf32>
    %21 = arith.mulf %20, %17 : vector<16x256xf32>
    %22 = arith.select %19, %17, %21 : vector<16x256xi1>, vector<16x256xf32>
    %23 = arith.truncf %22 : vector<16x256xf32> to vector<16x256xbf16>
    %c0_14 = arith.constant 0 : index
    %c0_15 = arith.constant 0 : index
    %24 = vector.load %arg6[%c0_14, %c0_15] : memref<256x128xbf16, #tpu.memory_space<vmem>>, vector<256x128xbf16>
    %cst_16 = arith.constant dense<0.000000e+00> : vector<16x128xf32>
    %25 = tpu.matmul %23, %24, %cst_16 {dimension_numbers = #tpu.dot_dimension_numbers<[1], [0], [0], [1], [0, 0, 1, 1], [], []>} : vector<16x256xbf16>, vector<256x128xbf16>, vector<16x128xf32> -> vector<16x128xf32>
    %26 = vector.extract_strided_slice %25 {offsets = [0, 0], sizes = [16, 1], strides = [1, 1]} : vector<16x128xf32> to vector<16x1xf32>
    %c0_17 = arith.constant 0 : index
    %c0_18 = arith.constant 0 : index
    %27 = vector.load %arg7[%c0_17, %c0_18] : memref<1x1xf32, #tpu.memory_space<vmem>>, vector<1x1xf32>
    %28 = vector.broadcast %27 : vector<1x1xf32> to vector<16x1xf32>
    %29 = arith.addf %26, %28 : vector<16x1xf32>
    %30 = arith.negf %29 : vector<16x1xf32>
    %31 = math.exp %30 : vector<16x1xf32>
    %cst_19 = arith.constant 1.000000e+00 : f32
    %32 = vector.broadcast %cst_19 : f32 to vector<16x1xf32>
    %33 = arith.addf %32, %31 : vector<16x1xf32>
    %34 = arith.divf %32, %33 : vector<16x1xf32>
    %c0_20 = arith.constant 0 : index
    %c0_21 = arith.constant 0 : index
    %35 = vector.load %arg8[%c0_20, %c0_21] : memref<16x1xf32, #tpu.memory_space<vmem>>, vector<16x1xf32>
    tpu.vector_store %arg8[%c0_20, %c0_21], %34 {strides = array<i32>} : memref<16x1xf32, #tpu.memory_space<vmem>>, vector<16x1xf32>,
    return
  }
  func.func @transform_0(%arg0: i32) -> (i32, i32) {
    %c0_i32 = arith.constant 0 : i32
    %c0_i32_0 = arith.constant 0 : i32
    return %arg0, %c0_i32 : i32, i32
  }
  func.func @transform_1(%arg0: i32) -> (i32, i32) {
    %c0_i32 = arith.constant 0 : i32
    %c0_i32_0 = arith.constant 0 : i32
    %c0_i32_1 = arith.constant 0 : i32
    return %c0_i32, %c0_i32_0 : i32, i32
  }
  func.func @transform_2(%arg0: i32) -> (i32, i32) {
    %c0_i32 = arith.constant 0 : i32
    %c0_i32_0 = arith.constant 0 : i32
    %c0_i32_1 = arith.constant 0 : i32
    return %c0_i32, %c0_i32_0 : i32, i32
  }
  func.func @transform_3(%arg0: i32) -> (i32, i32) {
    %c0_i32 = arith.constant 0 : i32
    %c0_i32_0 = arith.constant 0 : i32
    %c0_i32_1 = arith.constant 0 : i32
    return %c0_i32, %c0_i32_0 : i32, i32
  }
  func.func @transform_4(%arg0: i32) -> (i32, i32) {
    %c0_i32 = arith.constant 0 : i32
    %c0_i32_0 = arith.constant 0 : i32
    %c0_i32_1 = arith.constant 0 : i32
    return %c0_i32, %c0_i32_0 : i32, i32
  }
  func.func @transform_5(%arg0: i32) -> (i32, i32) {
    %c0_i32 = arith.constant 0 : i32
    %c0_i32_0 = arith.constant 0 : i32
    %c0_i32_1 = arith.constant 0 : i32
    return %c0_i32, %c0_i32_0 : i32, i32
  }
  func.func @transform_6(%arg0: i32) -> (i32, i32) {
    %c0_i32 = arith.constant 0 : i32
    %c0_i32_0 = arith.constant 0 : i32
    %c0_i32_1 = arith.constant 0 : i32
    return %c0_i32, %c0_i32_0 : i32, i32
  }
  func.func @transform_7(%arg0: i32) -> (i32, i32) {
    %c0_i32 = arith.constant 0 : i32
    %c0_i32_0 = arith.constant 0 : i32
    return %arg0, %c0_i32 : i32, i32
  }
}

</mosaic_0001>

<llo_original>
// kernel: discriminator_forward.1
$region0: #{discriminator_forward.1}
  #allocation0 [shape = 'u32[]', space=smem, size = 0x4, offset = 0x4, fixed_abs, tag = 'smem constant byte address 0x4 - core index']
  #allocation1 [shape = 'u32[144,128]{1,0:T(1,128)}', space=vmem, size = 0x12000, scoped, tag = 'internal scratch']
  #allocation2 [shape = 'f32[1,1]{1,0:T(1,128)S(1)}', space=vmem, size = 0x200, scoped, tag = 'scoped memory for discriminator_forward.1']
  %s0 = inlined_call_operand.vmem [shape: f32[20,784], index: 0, kind: input, shape index: {}]
  %s1 = inlined_call_operand.vmem [shape: bf16[784,512], index: 1, kind: input, shape index: {}]
  %s2 = inlined_call_operand.vmem [shape: f32[1,512], index: 2, kind: input, shape index: {}]
  %s3 = inlined_call_operand.vmem [shape: bf16[512,256], index: 3, kind: input, shape index: {}]
  %s4 = inlined_call_operand.vmem [shape: f32[1,256], index: 4, kind: input, shape index: {}]
  %s5 = inlined_call_operand.vmem [shape: bf16[256,128], index: 5, kind: input, shape index: {}]
  %s6 = inlined_call_operand.<no memory space> [shape: f32[1,1], index: 6, kind: input, shape index: {}]
  %s7 = inlined_call_operand.vmem [shape: f32[20,1], index: 7, kind: output, shape index: {}]
  %s8 = sld [smem:[#allocation0]]
  $region109: #{discriminator_forward.1} parent=0
    _
  %s10 = ssub.s32 1, %s8
  %s11 = scalar_select 0, %s10, %s8
  %v12 = vstv %s6
  %13 = vst [vmem:[#allocation2] sm:$0x1] %v12
  $region1: #{discriminator_forward.1} parent=0
    #allocation3 [shape = 'u8[16384]{0}', space=vmem, size = 0x4000, scoped, tag = 'output window, operand 0']
    loop: start=0, step=1, limit=4
    $region2: #{discriminator_forward.1} parent=1 // loop_pre_header
      _
    $region3: #{discriminator_forward.1} parent=1 // loop_header
      %s15 = sphi 0, %s19
      %p16 = scmp.ge.s32.totalorder %s15, 4
      %s25 = sphi 0, %s27
      %s28 = sphi 0, %s25
      %s29 = sphi 0, %s28
      %s45 = sphi 0, %s29
      %s49 = sphi 0, %s49
      %s51 = sphi 0, %s49
      %s52 = sphi 0, %s51
      %s66 = sphi 0, %s52
      %s70 = sphi 0, %s70
      %s72 = sphi 0, %s70
      %s73 = sphi 0, %s72
      %s87 = sphi 0, %s73
      %s91 = sphi 0, %s91
      %s93 = sphi 0, %s91
      %s94 = sphi 0, %s93
      %s108 = sphi 0, %s94
      %s112 = sphi 0, %s112
      %s114 = sphi 0, %s112
      %s115 = sphi 0, %s114
      %s129 = sphi 0, %s115
      %s133 = sphi 0, %s133
      %s135 = sphi 0, %s133
      %s136 = sphi 0, %s135
      %s150 = sphi 0, %s136
      %s154 = sphi 0, %s154
      %s156 = sphi 0, %s154
      %s157 = sphi 0, %s156
      %s171 = sphi 0, %s157
      %s177 = sphi 0, %s179
      %s180 = sphi 0, %s177
      %s181 = sphi 0, %s180
      %s197 = sphi 0, %s181
    $region4: #{discriminator_forward.1} parent=1 // loop_header_branch
      %18 = sbr.rel (%p16) target = $region8
    $region5: #{discriminator_forward.1} parent=1 // loop_body
      %s20 = ssub.s32 %s15, 1
      %s21 = ssub.s32 %s15, 2
      %s22 = sadd.s32 %s15, 1
      %s23 = ssub.s32 %s15, %s22
      %p24 = scmp.eq.s32.totalorder %s23, 0
      %s26 = sadd.s32 %s25, 1
      %s27 = scalar_select %p24, %s25, %s26
      %p30 = pneg %p24
      %p31 = scmp.eq.s32.totalorder %s15, 1
      %p32 = por %p30, %p31
      %p33 = scmp.ne.s32.totalorder %s25, %s28
      %p34 = scmp.eq.s32.totalorder %s15, 0
      %p35 = por %p33, %p34
      %p36 = scmp.ne.s32.totalorder %s25, %s28
      %p37 = scmp.eq.s32.totalorder %s20, 1
      %p38 = por %p36, %p37
      %p39 = scmp.ne.s32.totalorder %s28, %s29
      %p40 = scmp.eq.s32.totalorder %s20, 0
      %p41 = por %p39, %p40
      %p42 = scmp.ne.s32.totalorder %s28, %s29
      %p43 = scmp.eq.s32.totalorder %s21, 1
      %p44 = por %p42, %p43
      %p46 = scmp.ne.s32.totalorder %s29, %s45
      %p47 = scmp.eq.s32.totalorder %s21, 0
      %p48 = por %p46, %p47
      %s50 = sadd.s32 %s49, 1
      %p53 = scmp.eq.s32.totalorder %s15, 1
      %p54 = scmp.ne.s32.totalorder %s49, %s51
      %p55 = scmp.eq.s32.totalorder %s15, 0
      %p56 = por %p54, %p55
      %p57 = scmp.ne.s32.totalorder %s49, %s51
      %p58 = scmp.eq.s32.totalorder %s20, 1
      %p59 = por %p57, %p58
      %p60 = scmp.ne.s32.totalorder %s51, %s52
      %p61 = scmp.eq.s32.totalorder %s20, 0
      %p62 = por %p60, %p61
      %p63 = scmp.ne.s32.totalorder %s51, %s52
      %p64 = scmp.eq.s32.totalorder %s21, 1
      %p65 = por %p63, %p64
      %p67 = scmp.ne.s32.totalorder %s52, %s66
      %p68 = scmp.eq.s32.totalorder %s21, 0
      %p69 = por %p67, %p68
      %s71 = sadd.s32 %s70, 1
      %p74 = scmp.eq.s32.totalorder %s15, 1
      %p75 = scmp.ne.s32.totalorder %s70, %s72
      %p76 = scmp.eq.s32.totalorder %s15, 0
      %p77 = por %p75, %p76
      %p78 = scmp.ne.s32.totalorder %s70, %s72
      %p79 = scmp.eq.s32.totalorder %s20, 1
      %p80 = por %p78, %p79
      %p81 = scmp.ne.s32.totalorder %s72, %s73
      %p82 = scmp.eq.s32.totalorder %s20, 0
      %p83 = por %p81, %p82
      %p84 = scmp.ne.s32.totalorder %s72, %s73
      %p85 = scmp.eq.s32.totalorder %s21, 1
      %p86 = por %p84, %p85
      %p88 = scmp.ne.s32.totalorder %s73, %s87
      %p89 = scmp.eq.s32.totalorder %s21, 0
      %p90 = por %p88, %p89
      %s92 = sadd.s32 %s91, 1
      %p95 = scmp.eq.s32.totalorder %s15, 1
      %p96 = scmp.ne.s32.totalorder %s91, %s93
      %p97 = scmp.eq.s32.totalorder %s15, 0
      %p98 = por %p96, %p97
      %p99 = scmp.ne.s32.totalorder %s91, %s93
      %p100 = scmp.eq.s32.totalorder %s20, 1
      %p101 = por %p99, %p100
      %p102 = scmp.ne.s32.totalorder %s93, %s94
      %p103 = scmp.eq.s32.totalorder %s20, 0
      %p104 = por %p102, %p103
      %p105 = scmp.ne.s32.totalorder %s93, %s94
      %p106 = scmp.eq.s32.totalorder %s21, 1
      %p107 = por %p105, %p106
      %p109 = scmp.ne.s32.totalorder %s94, %s108
      %p110 = scmp.eq.s32.totalorder %s21, 0
      %p111 = por %p109, %p110
      %s113 = sadd.s32 %s112, 1
      %p116 = scmp.eq.s32.totalorder %s15, 1
      %p117 = scmp.ne.s32.totalorder %s112, %s114
      %p118 = scmp.eq.s32.totalorder %s15, 0
      %p119 = por %p117, %p118
      %p120 = scmp.ne.s32.totalorder %s112, %s114
      %p121 = scmp.eq.s32.totalorder %s20, 1
      %p122 = por %p120, %p121
      %p123 = scmp.ne.s32.totalorder %s114, %s115
      %p124 = scmp.eq.s32.totalorder %s20, 0
      %p125 = por %p123, %p124
      %p126 = scmp.ne.s32.totalorder %s114, %s115
      %p127 = scmp.eq.s32.totalorder %s21, 1
      %p128 = por %p126, %p127
      %p130 = scmp.ne.s32.totalorder %s115, %s129
      %p131 = scmp.eq.s32.totalorder %s21, 0
      %p132 = por %p130, %p131
      %s134 = sadd.s32 %s133, 1
      %p137 = scmp.eq.s32.totalorder %s15, 1
      %p138 = scmp.ne.s32.totalorder %s133, %s135
      %p139 = scmp.eq.s32.totalorder %s15, 0
      %p140 = por %p138, %p139
      %p141 = scmp.ne.s32.totalorder %s133, %s135
      %p142 = scmp.eq.s32.totalorder %s20, 1
      %p143 = por %p141, %p142
      %p144 = scmp.ne.s32.totalorder %s135, %s136
      %p145 = scmp.eq.s32.totalorder %s20, 0
      %p146 = por %p144, %p145
      %p147 = scmp.ne.s32.totalorder %s135, %s136
      %p148 = scmp.eq.s32.totalorder %s21, 1
      %p149 = por %p147, %p148
      %p151 = scmp.ne.s32.totalorder %s136, %s150
      %p152 = scmp.eq.s32.totalorder %s21, 0
      %p153 = por %p151, %p152
      %s155 = sadd.s32 %s154, 1
      %p158 = scmp.eq.s32.totalorder %s15, 1
      %p159 = scmp.ne.s32.totalorder %s154, %s156
      %p160 = scmp.eq.s32.totalorder %s15, 0
      %p161 = por %p159, %p160
      %p162 = scmp.ne.s32.totalorder %s154, %s156
      %p163 = scmp.eq.s32.totalorder %s20, 1
      %p164 = por %p162, %p163
      %p165 = scmp.ne.s32.totalorder %s156, %s157
      %p166 = scmp.eq.s32.totalorder %s20, 0
      %p167 = por %p165, %p166
      %p168 = scmp.ne.s32.totalorder %s156, %s157
      %p169 = scmp.eq.s32.totalorder %s21, 1
      %p170 = por %p168, %p169
      %p172 = scmp.ne.s32.totalorder %s157, %s171
      %p173 = scmp.eq.s32.totalorder %s21, 0
      %p174 = por %p172, %p173
      %s175 = ssub.s32 %s15, %s22
      %p176 = scmp.eq.s32.totalorder %s175, 0
      %s178 = sadd.s32 %s177, 1
      %s179 = scalar_select %p176, %s177, %s178
      %p182 = pneg %p176
      %p183 = scmp.eq.s32.totalorder %s15, 1
      %p184 = por %p182, %p183
      %p185 = scmp.ne.s32.totalorder %s177, %s180
      %p186 = scmp.eq.s32.totalorder %s15, 0
      %p187 = por %p185, %p186
      %p188 = scmp.ne.s32.totalorder %s177, %s180
      %p189 = scmp.eq.s32.totalorder %s20, 1
      %p190 = por %p188, %p189
      %p191 = scmp.ne.s32.totalorder %s180, %s181
      %p192 = scmp.eq.s32.totalorder %s20, 0
      %p193 = por %p191, %p192
      %p194 = scmp.ne.s32.totalorder %s180, %s181
      %p195 = scmp.eq.s32.totalorder %s21, 1
      %p196 = por %p194, %p195
      %p198 = scmp.ne.s32.totalorder %s181, %s197
      %p199 = scmp.eq.s32.totalorder %s21, 0
      %p200 = por %p198, %p199
      %p201 = scmp.le.s32.totalorder 1, %s15
      %p202 = scmp.lt.s32.totalorder %s15, 3
      %p203 = pnand %p201, %p202
      %p204 = pneg %p203
      // Predicated region
      $region9: #{discriminator_forward.1} parent=5 // pred_check
        _
      $region10: #{discriminator_forward.1} parent=5 // pred_check_branch
        %206 = sbr.rel (%p203) target = $region12
      $region11: #{discriminator_forward.1} parent=5 // pred_region
        %s207 = ssub.s32 %s15, 1
        // Predicated region
        $region13: #{discriminator_forward.1} parent=11 // pred_check
          %p208 = pneg %p62
        $region14: #{discriminator_forward.1} parent=11 // pred_check_branch
          %210 = sbr.rel (%p208) target = $region16
        $region15: #{discriminator_forward.1} parent=11 // pred_region
          _
        $region16: #{discriminator_forward.1} parent=11 // pred_fallthru
          _
        // Predicated region
        $region17: #{discriminator_forward.1} parent=11 // pred_check
          %p211 = pneg %p83
        $region18: #{discriminator_forward.1} parent=11 // pred_check_branch
          %213 = sbr.rel (%p211) target = $region20
        $region19: #{discriminator_forward.1} parent=11 // pred_region
          _
        $region20: #{discriminator_forward.1} parent=11 // pred_fallthru
          _
        // Predicated region
        $region21: #{discriminator_forward.1} parent=11 // pred_check
          %p214 = pneg %p104
        $region22: #{discriminator_forward.1} parent=11 // pred_check_branch
          %216 = sbr.rel (%p214) target = $region24
        $region23: #{discriminator_forward.1} parent=11 // pred_region
          _
        $region24: #{discriminator_forward.1} parent=11 // pred_fallthru
          _
        // Predicated region
        $region25: #{discriminator_forward.1} parent=11 // pred_check
          %p217 = pneg %p125
        $region26: #{discriminator_forward.1} parent=11 // pred_check_branch
          %219 = sbr.rel (%p217) target = $region28
        $region27: #{discriminator_forward.1} parent=11 // pred_region
          _
        $region28: #{discriminator_forward.1} parent=11 // pred_fallthru
          _
        // Predicated region
        $region29: #{discriminator_forward.1} parent=11 // pred_check
          %p220 = pneg %p146
        $region30: #{discriminator_forward.1} parent=11 // pred_check_branch
          %222 = sbr.rel (%p220) target = $region32
        $region31: #{discriminator_forward.1} parent=11 // pred_region
          _
        $region32: #{discriminator_forward.1} parent=11 // pred_fallthru
          _
        // Predicated region
        $region33: #{discriminator_forward.1} parent=11 // pred_check
          %p223 = pneg %p167
        $region34: #{discriminator_forward.1} parent=11 // pred_check_branch
          %225 = sbr.rel (%p223) target = $region36
        $region35: #{discriminator_forward.1} parent=11 // pred_region
          _
        $region36: #{discriminator_forward.1} parent=11 // pred_fallthru
          _
      $region12: #{discriminator_forward.1} parent=5 // pred_fallthru
        _
      %p226 = scmp.lt.s32.totalorder %s15, 2
      // Predicated region
      $region37: #{discriminator_forward.1} parent=5 // pred_check
        %p227 = pneg %p226
      $region38: #{discriminator_forward.1} parent=5 // pred_check_branch
        %229 = sbr.rel (%p227) target = $region40
      $region39: #{discriminator_forward.1} parent=5 // pred_region
        // Predicated region
        $region41: #{discriminator_forward.1} parent=39 // pred_check
          %p230 = pneg %p35
        $region42: #{discriminator_forward.1} parent=39 // pred_check_branch
          %232 = sbr.rel (%p230) target = $region44
        $region43: #{discriminator_forward.1} parent=39 // pred_region
          %s233 = smul.u32 2, %s15
          %s234 = ssub.s32 3, %s233
          %p235 = scmp.lt.s32.totalorder %s234, 2
          %s236 = scalar_select %p235, %s234, 2
          %s237 = smul.u32 128, %s236
          %s238 = smul.u32 %s237, 7
          %p239 = scmp.lt.s32.totalorder %s233, 2
          %s240 = scalar_select %p239, %s233, 2
          %s241 = smul.addr %s240, 7
          %s242 = smul.addr %s241, 8
          %s243 = scalar_lea.vmem %s0, %s242
          %s244 = smul.u32 2, %s15
          %s245 = ssub.s32 3, %s244
          %p246 = scmp.lt.s32.totalorder %s245, 2
          %s247 = scalar_select %p246, %s245, 2
          %s248 = smul.u32 128, %s247
          %s249 = smul.u32 %s248, 7
        $region44: #{discriminator_forward.1} parent=39 // pred_fallthru
          _
      $region40: #{discriminator_forward.1} parent=5 // pred_fallthru
        _
      %p250 = scmp.le.s32.totalorder 1, %s15
      %p251 = scmp.lt.s32.totalorder %s15, 3
      %p252 = pnand %p250, %p251
      %p253 = pneg %p252
      // Predicated region
      $region45: #{discriminator_forward.1} parent=5 // pred_check
        _
      $region46: #{discriminator_forward.1} parent=5 // pred_check_branch
        %255 = sbr.rel (%p252) target = $region48
      $region47: #{discriminator_forward.1} parent=5 // pred_region
        %s256 = ssub.s32 %s15, 1
        %s257 = smul.u32 2, %s20
        %s258 = ssub.s32 3, %s257
        %p259 = scmp.lt.s32.totalorder %s258, 2
        %s260 = scalar_select %p259, %s258, 2
        %s261 = smul.u32 128, %s260
        %s262 = smul.u32 %s261, 7
        %p263 = scmp.lt.s32.totalorder %s257, 2
        %s264 = scalar_select %p263, %s257, 2
        %s265 = smul.addr %s264, 7
        %s266 = smul.addr %s265, 8
        %s267 = scalar_lea.vmem %s0, %s266
        %p268 = pneg %p41
        %p269 = pneg %p38
        %p270 = pneg %p62
        %p271 = pneg %p59
        %p272 = pneg %p83
        %p273 = pneg %p80
        %p274 = pneg %p104
        %p275 = pneg %p101
        %p276 = pneg %p125
        %p277 = pneg %p122
        %p278 = pneg %p146
        %p279 = pneg %p143
        %p280 = pneg %p167
        %p281 = pneg %p164
        %p282 = pneg %p193
        %p283 = pneg %p190
        %s284 = sand.u32 %s180, 1
        %s285 = sand.u32 %s180, 1
        %s286 = smul.addr %s285, 16
        %s287 = scalar_lea.vmem [#allocation3], %s286
        %s288 = smul.u32 2, %s20
        %s289 = ssub.s32 3, %s288
        %p290 = scmp.lt.s32.totalorder %s289, 2
        %s291 = scalar_select %p290, %s289, 2
        %s292 = smul.u32 128, %s291
        %s293 = smul.u32 %s292, 7
        %p294 = scmp.lt.s32.totalorder %s288, 2
        %s295 = scalar_select %p294, %s288, 2
        %s296 = smul.addr %s295, 7
        %s297 = smul.addr %s296, 8
        %s298 = scalar_lea.vmem %s0, %s297
        %s299 = smul.u32 2, %s20
        %s300 = ssub.s32 3, %s299
        %p301 = scmp.lt.s32.totalorder %s300, 2
        %s302 = scalar_select %p301, %s300, 2
        %s303 = smul.u32 128, %s302
        %s304 = smul.u32 %s303, 7
        %s305 = smul.u32 2, %s20
        %s306 = ssub.s32 3, %s305
        %p307 = scmp.lt.s32.totalorder %s306, 2
        %s308 = scalar_select %p307, %s306, 2
        %s309 = smul.u32 128, %s308
        %v311 = vld [vmem:[%s298] sm:$0xff]
        %v312 = vld [vmem:[%s298 + $0x8] sm:$0xff]
        %v313 = vld [vmem:[%s298 + $0x10] sm:$0xff]
        %v314 = vld [vmem:[%s298 + $0x18] sm:$0xff]
        %v315 = vld [vmem:[%s298 + $0x20] sm:$0xff]
        %v316 = vld [vmem:[%s298 + $0x28] sm:$0xff]
        %v317 = vld [vmem:[%s298 + $0x30] sm:$0xff]
        %v318 = vld [vmem:[%s298 + $0x38] sm:$0xff]
        %v319 = vld [vmem:[%s298 + $0x40] sm:$0xff]
        %v320 = vld [vmem:[%s298 + $0x48] sm:$0xff]
        %v321 = vld [vmem:[%s298 + $0x50] sm:$0xff]
        %v322 = vld [vmem:[%s298 + $0x58] sm:$0xff]
        %v323 = vld [vmem:[%s298 + $0x60] sm:$0xff]
        %v324 = vld [vmem:[%s298 + $0x68] sm:$0xff]
        %v325 = vpack.c.bf16 %v318, %v311
        %v326 = vpack.c.bf16 %v319, %v312
        %v327 = vpack.c.bf16 %v320, %v313
        %v328 = vpack.c.bf16 %v321, %v314
        %v329 = vpack.c.bf16 %v322, %v315
        %v330 = vpack.c.bf16 %v323, %v316
        %v331 = vpack.c.bf16 %v324, %v317
        %v332 = vld [vmem:[%s1] sm:$0xff]
        %v333 = vld [vmem:[%s1 + $0x8] sm:$0xff]
        %v334 = vld [vmem:[%s1 + $0x10] sm:$0xff]
        %v335 = vld [vmem:[%s1 + $0x18] sm:$0xff]
        %v336 = vld [vmem:[%s1 + $0x20] sm:$0xff]
        %v337 = vld [vmem:[%s1 + $0x28] sm:$0xff]
        %v338 = vld [vmem:[%s1 + $0x30] sm:$0xff]
        %v339 = vld [vmem:[%s1 + $0x38] sm:$0xff]
        %v340 = vld [vmem:[%s1 + $0x40] sm:$0xff]
        %v341 = vld [vmem:[%s1 + $0x48] sm:$0xff]
        %v342 = vld [vmem:[%s1 + $0x50] sm:$0xff]
        %v343 = vld [vmem:[%s1 + $0x58] sm:$0xff]
        %v344 = vld [vmem:[%s1 + $0x60] sm:$0xff]
        %v345 = vld [vmem:[%s1 + $0x68] sm:$0xff]
        %v346 = vld [vmem:[%s1 + $0x70] sm:$0xff]
        %v347 = vld [vmem:[%s1 + $0x78] sm:$0xff]
        %v348 = vld [vmem:[%s1 + $0x80] sm:$0xff]
        %v349 = vld [vmem:[%s1 + $0x88] sm:$0xff]
        %v350 = vld [vmem:[%s1 + $0x90] sm:$0xff]
        %v351 = vld [vmem:[%s1 + $0x98] sm:$0xff]
        %v352 = vld [vmem:[%s1 + $0xa0] sm:$0xff]
        %v353 = vld [vmem:[%s1 + $0xa8] sm:$0xff]
        %v354 = vld [vmem:[%s1 + $0xb0] sm:$0xff]
        %v355 = vld [vmem:[%s1 + $0xb8] sm:$0xff]
        %v356 = vld [vmem:[%s1 + $0xc0] sm:$0xff]
        %v357 = vld [vmem:[%s1 + $0xc8] sm:$0xff]
        %v358 = vld [vmem:[%s1 + $0xd0] sm:$0xff]
        %v359 = vld [vmem:[%s1 + $0xd8] sm:$0xff]
        %v360 = vld [vmem:[%s1 + $0xe0] sm:$0xff]
        %v361 = vld [vmem:[%s1 + $0xe8] sm:$0xff]
        %v362 = vld [vmem:[%s1 + $0xf0] sm:$0xff]
        %v363 = vld [vmem:[%s1 + $0xf8] sm:$0xff]
        %v364 = vld [vmem:[%s1 + $0x100] sm:$0xff]
        %v365 = vld [vmem:[%s1 + $0x108] sm:$0xff]
        %v366 = vld [vmem:[%s1 + $0x110] sm:$0xff]
        %v367 = vld [vmem:[%s1 + $0x118] sm:$0xff]
        %v368 = vld [vmem:[%s1 + $0x120] sm:$0xff]
        %v369 = vld [vmem:[%s1 + $0x128] sm:$0xff]
        %v370 = vld [vmem:[%s1 + $0x130] sm:$0xff]
        %v371 = vld [vmem:[%s1 + $0x138] sm:$0xff]
        %v372 = vld [vmem:[%s1 + $0x140] sm:$0xff]
        %v373 = vld [vmem:[%s1 + $0x148] sm:$0xff]
        %v374 = vld [vmem:[%s1 + $0x150] sm:$0xff]
        %v375 = vld [vmem:[%s1 + $0x158] sm:$0xff]
        %v376 = vld [vmem:[%s1 + $0x160] sm:$0xff]
        %v377 = vld [vmem:[%s1 + $0x168] sm:$0xff]
        %v378 = vld [vmem:[%s1 + $0x170] sm:$0xff]
        %v379 = vld [vmem:[%s1 + $0x178] sm:$0xff]
        %v380 = vld [vmem:[%s1 + $0x180] sm:$0xff]
        %v381 = vld [vmem:[%s1 + $0x188] sm:$0xff]
        %v382 = vld [vmem:[%s1 + $0x190] sm:$0xff]
        %v383 = vld [vmem:[%s1 + $0x198] sm:$0xff]
        %v384 = vld [vmem:[%s1 + $0x1a0] sm:$0xff]
        %v385 = vld [vmem:[%s1 + $0x1a8] sm:$0xff]
        %v386 = vld [vmem:[%s1 + $0x1b0] sm:$0xff]
        %v387 = vld [vmem:[%s1 + $0x1b8] sm:$0xff]
        %v388 = vld [vmem:[%s1 + $0x1c0] sm:$0xff]
        %v389 = vld [vmem:[%s1 + $0x1c8] sm:$0xff]
        %v390 = vld [vmem:[%s1 + $0x1d0] sm:$0xff]
        %v391 = vld [vmem:[%s1 + $0x1d8] sm:$0xff]
        %v392 = vld [vmem:[%s1 + $0x1e0] sm:$0xff]
        %v393 = vld [vmem:[%s1 + $0x1e8] sm:$0xff]
        %v394 = vld [vmem:[%s1 + $0x1f0] sm:$0xff]
        %v395 = vld [vmem:[%s1 + $0x1f8] sm:$0xff]
        %v396 = vld [vmem:[%s1 + $0x200] sm:$0xff]
        %v397 = vld [vmem:[%s1 + $0x208] sm:$0xff]
        %v398 = vld [vmem:[%s1 + $0x210] sm:$0xff]
        %v399 = vld [vmem:[%s1 + $0x218] sm:$0xff]
        %v400 = vld [vmem:[%s1 + $0x220] sm:$0xff]
        %v401 = vld [vmem:[%s1 + $0x228] sm:$0xff]
        %v402 = vld [vmem:[%s1 + $0x230] sm:$0xff]
        %v403 = vld [vmem:[%s1 + $0x238] sm:$0xff]
        %v404 = vld [vmem:[%s1 + $0x240] sm:$0xff]
        %v405 = vld [vmem:[%s1 + $0x248] sm:$0xff]
        %v406 = vld [vmem:[%s1 + $0x250] sm:$0xff]
        %v407 = vld [vmem:[%s1 + $0x258] sm:$0xff]
        %v408 = vld [vmem:[%s1 + $0x260] sm:$0xff]
        %v409 = vld [vmem:[%s1 + $0x268] sm:$0xff]
        %v410 = vld [vmem:[%s1 + $0x270] sm:$0xff]
        %v411 = vld [vmem:[%s1 + $0x278] sm:$0xff]
        %v412 = vld [vmem:[%s1 + $0x280] sm:$0xff]
        %v413 = vld [vmem:[%s1 + $0x288] sm:$0xff]
        %v414 = vld [vmem:[%s1 + $0x290] sm:$0xff]
        %v415 = vld [vmem:[%s1 + $0x298] sm:$0xff]
        %v416 = vld [vmem:[%s1 + $0x2a0] sm:$0xff]
        %v417 = vld [vmem:[%s1 + $0x2a8] sm:$0xff]
        %v418 = vld [vmem:[%s1 + $0x2b0] sm:$0xff]
        %v419 = vld [vmem:[%s1 + $0x2b8] sm:$0xff]
        %v420 = vld [vmem:[%s1 + $0x2c0] sm:$0xff]
        %v421 = vld [vmem:[%s1 + $0x2c8] sm:$0xff]
        %v422 = vld [vmem:[%s1 + $0x2d0] sm:$0xff]
        %v423 = vld [vmem:[%s1 + $0x2d8] sm:$0xff]
        %v424 = vld [vmem:[%s1 + $0x2e0] sm:$0xff]
        %v425 = vld [vmem:[%s1 + $0x2e8] sm:$0xff]
        %v426 = vld [vmem:[%s1 + $0x2f0] sm:$0xff]
        %v427 = vld [vmem:[%s1 + $0x2f8] sm:$0xff]
        %v428 = vld [vmem:[%s1 + $0x300] sm:$0xff]
        %v429 = vld [vmem:[%s1 + $0x308] sm:$0xff]
        %v430 = vld [vmem:[%s1 + $0x310] sm:$0xff]
        %v431 = vld [vmem:[%s1 + $0x318] sm:$0xff]
        %v432 = vld [vmem:[%s1 + $0x320] sm:$0xff]
        %v433 = vld [vmem:[%s1 + $0x328] sm:$0xff]
        %v434 = vld [vmem:[%s1 + $0x330] sm:$0xff]
        %v435 = vld [vmem:[%s1 + $0x338] sm:$0xff]
        %v436 = vld [vmem:[%s1 + $0x340] sm:$0xff]
        %v437 = vld [vmem:[%s1 + $0x348] sm:$0xff]
        %v438 = vld [vmem:[%s1 + $0x350] sm:$0xff]
        %v439 = vld [vmem:[%s1 + $0x358] sm:$0xff]
        %v440 = vld [vmem:[%s1 + $0x360] sm:$0xff]
        %v441 = vld [vmem:[%s1 + $0x368] sm:$0xff]
        %v442 = vld [vmem:[%s1 + $0x370] sm:$0xff]
        %v443 = vld [vmem:[%s1 + $0x378] sm:$0xff]
        %v444 = vld [vmem:[%s1 + $0x380] sm:$0xff]
        %v445 = vld [vmem:[%s1 + $0x388] sm:$0xff]
        %v446 = vld [vmem:[%s1 + $0x390] sm:$0xff]
        %v447 = vld [vmem:[%s1 + $0x398] sm:$0xff]
        %v448 = vld [vmem:[%s1 + $0x3a0] sm:$0xff]
        %v449 = vld [vmem:[%s1 + $0x3a8] sm:$0xff]
        %v450 = vld [vmem:[%s1 + $0x3b0] sm:$0xff]
        %v451 = vld [vmem:[%s1 + $0x3b8] sm:$0xff]
        %v452 = vld [vmem:[%s1 + $0x3c0] sm:$0xff]
        %v453 = vld [vmem:[%s1 + $0x3c8] sm:$0xff]
        %v454 = vld [vmem:[%s1 + $0x3d0] sm:$0xff]
        %v455 = vld [vmem:[%s1 + $0x3d8] sm:$0xff]
        %v456 = vld [vmem:[%s1 + $0x3e0] sm:$0xff]
        %v457 = vld [vmem:[%s1 + $0x3e8] sm:$0xff]
        %v458 = vld [vmem:[%s1 + $0x3f0] sm:$0xff]
        %v459 = vld [vmem:[%s1 + $0x3f8] sm:$0xff]
        %v460 = vld [vmem:[%s1 + $0x400] sm:$0xff]
        %v461 = vld [vmem:[%s1 + $0x408] sm:$0xff]
        %v462 = vld [vmem:[%s1 + $0x410] sm:$0xff]
        %v463 = vld [vmem:[%s1 + $0x418] sm:$0xff]
        %v464 = vld [vmem:[%s1 + $0x420] sm:$0xff]
        %v465 = vld [vmem:[%s1 + $0x428] sm:$0xff]
        %v466 = vld [vmem:[%s1 + $0x430] sm:$0xff]
        %v467 = vld [vmem:[%s1 + $0x438] sm:$0xff]
        %v468 = vld [vmem:[%s1 + $0x440] sm:$0xff]
        %v469 = vld [vmem:[%s1 + $0x448] sm:$0xff]
        %v470 = vld [vmem:[%s1 + $0x450] sm:$0xff]
        %v471 = vld [vmem:[%s1 + $0x458] sm:$0xff]
        %v472 = vld [vmem:[%s1 + $0x460] sm:$0xff]
        %v473 = vld [vmem:[%s1 + $0x468] sm:$0xff]
        %v474 = vld [vmem:[%s1 + $0x470] sm:$0xff]
        %v475 = vld [vmem:[%s1 + $0x478] sm:$0xff]
        %v476 = vld [vmem:[%s1 + $0x480] sm:$0xff]
        %v477 = vld [vmem:[%s1 + $0x488] sm:$0xff]
        %v478 = vld [vmem:[%s1 + $0x490] sm:$0xff]
        %v479 = vld [vmem:[%s1 + $0x498] sm:$0xff]
        %v480 = vld [vmem:[%s1 + $0x4a0] sm:$0xff]
        %v481 = vld [vmem:[%s1 + $0x4a8] sm:$0xff]
        %v482 = vld [vmem:[%s1 + $0x4b0] sm:$0xff]
        %v483 = vld [vmem:[%s1 + $0x4b8] sm:$0xff]
        %v484 = vld [vmem:[%s1 + $0x4c0] sm:$0xff]
        %v485 = vld [vmem:[%s1 + $0x4c8] sm:$0xff]
        %v486 = vld [vmem:[%s1 + $0x4d0] sm:$0xff]
        %v487 = vld [vmem:[%s1 + $0x4d8] sm:$0xff]
        %v488 = vld [vmem:[%s1 + $0x4e0] sm:$0xff]
        %v489 = vld [vmem:[%s1 + $0x4e8] sm:$0xff]
        %v490 = vld [vmem:[%s1 + $0x4f0] sm:$0xff]
        %v491 = vld [vmem:[%s1 + $0x4f8] sm:$0xff]
        %v492 = vld [vmem:[%s1 + $0x500] sm:$0xff]
        %v493 = vld [vmem:[%s1 + $0x508] sm:$0xff]
        %v494 = vld [vmem:[%s1 + $0x510] sm:$0xff]
        %v495 = vld [vmem:[%s1 + $0x518] sm:$0xff]
        %v496 = vld [vmem:[%s1 + $0x520] sm:$0xff]
        %v497 = vld [vmem:[%s1 + $0x528] sm:$0xff]
        %v498 = vld [vmem:[%s1 + $0x530] sm:$0xff]
        %v499 = vld [vmem:[%s1 + $0x538] sm:$0xff]
        %v500 = vld [vmem:[%s1 + $0x540] sm:$0xff]
        %v501 = vld [vmem:[%s1 + $0x548] sm:$0xff]
        %v502 = vld [vmem:[%s1 + $0x550] sm:$0xff]
        %v503 = vld [vmem:[%s1 + $0x558] sm:$0xff]
        %v504 = vld [vmem:[%s1 + $0x560] sm:$0xff]
        %v505 = vld [vmem:[%s1 + $0x568] sm:$0xff]
        %v506 = vld [vmem:[%s1 + $0x570] sm:$0xff]
        %v507 = vld [vmem:[%s1 + $0x578] sm:$0xff]
        %v508 = vld [vmem:[%s1 + $0x580] sm:$0xff]
        %v509 = vld [vmem:[%s1 + $0x588] sm:$0xff]
        %v510 = vld [vmem:[%s1 + $0x590] sm:$0xff]
        %v511 = vld [vmem:[%s1 + $0x598] sm:$0xff]
        %v512 = vld [vmem:[%s1 + $0x5a0] sm:$0xff]
        %v513 = vld [vmem:[%s1 + $0x5a8] sm:$0xff]
        %v514 = vld [vmem:[%s1 + $0x5b0] sm:$0xff]
        %v515 = vld [vmem:[%s1 + $0x5b8] sm:$0xff]
        %v516 = vld [vmem:[%s1 + $0x5c0] sm:$0xff]
        %v517 = vld [vmem:[%s1 + $0x5c8] sm:$0xff]
        %v518 = vld [vmem:[%s1 + $0x5d0] sm:$0xff]
        %v519 = vld [vmem:[%s1 + $0x5d8] sm:$0xff]
        %v520 = vld [vmem:[%s1 + $0x5e0] sm:$0xff]
        %v521 = vld [vmem:[%s1 + $0x5e8] sm:$0xff]
        %v522 = vld [vmem:[%s1 + $0x5f0] sm:$0xff]
        %v523 = vld [vmem:[%s1 + $0x5f8] sm:$0xff]
        %v524 = vld [vmem:[%s1 + $0x600] sm:$0xff]
        %v525 = vld [vmem:[%s1 + $0x608] sm:$0xff]
        %v526 = vld [vmem:[%s1 + $0x610] sm:$0xff]
        %v527 = vld [vmem:[%s1 + $0x618] sm:$0xff]
        %v528 = vld [vmem:[%s2] sm:$0xf]
        %v530 = vlaneseq
        %v531 = vshrl.u32 %v530, 7
        %v532 = vsub.s32 0, %v531
        %v533 = vrot.slane %v528, %v532
        %v534 = vlaneseq
        %v535 = vshrl.u32 %v534, 7
        %v536 = vsub.s32 1, %v535
        %v537 = vrot.slane %v528, %v536
        %v538 = vlaneseq
        %v539 = vshrl.u32 %v538, 7
        %v540 = vsub.s32 2, %v539
        %v541 = vrot.slane %v528, %v540
        %v542 = vlaneseq
        %v543 = vshrl.u32 %v542, 7
        %v544 = vsub.s32 3, %v543
        %v545 = vrot.slane %v528, %v544
        %v746 = vunpack.c.l.b16 %v332
        %v747 = vunpack.c.h.b16 %v332
        %v748 = vunpack.c.l.b16 %v333
        %v749 = vunpack.c.h.b16 %v333
        %v750 = vunpack.c.l.b16 %v334
        %v751 = vunpack.c.h.b16 %v334
        %v752 = vunpack.c.l.b16 %v335
        %v753 = vunpack.c.h.b16 %v335
        %v754 = vunpack.c.l.b16 %v336
        %v755 = vunpack.c.h.b16 %v336
        %v756 = vunpack.c.l.b16 %v337
        %v757 = vunpack.c.h.b16 %v337
        %v758 = vunpack.c.l.b16 %v338
        %v759 = vunpack.c.h.b16 %v338
        %v760 = vunpack.c.l.b16 %v339
        %v761 = vunpack.c.h.b16 %v339
        %v762 = vunpack.c.l.b16 %v340
        %v763 = vunpack.c.h.b16 %v340
        %v764 = vunpack.c.l.b16 %v341
        %v765 = vunpack.c.h.b16 %v341
        %v766 = vunpack.c.l.b16 %v342
        %v767 = vunpack.c.h.b16 %v342
        %v768 = vunpack.c.l.b16 %v343
        %v769 = vunpack.c.h.b16 %v343
        %v770 = vunpack.c.l.b16 %v344
        %v771 = vunpack.c.h.b16 %v344
        %v772 = vunpack.c.l.b16 %v345
        %v773 = vunpack.c.h.b16 %v345
        %v774 = vunpack.c.l.b16 %v346
        %v775 = vunpack.c.h.b16 %v346
        %v776 = vunpack.c.l.b16 %v347
        %v777 = vunpack.c.h.b16 %v347
        %v778 = vunpack.c.l.b16 %v348
        %v779 = vunpack.c.h.b16 %v348
        %v780 = vunpack.c.l.b16 %v349
        %v781 = vunpack.c.h.b16 %v349
        %v782 = vunpack.c.l.b16 %v350
        %v783 = vunpack.c.h.b16 %v350
        %v784 = vunpack.c.l.b16 %v351
        %v785 = vunpack.c.h.b16 %v351
        %v786 = vunpack.c.l.b16 %v352
        %v787 = vunpack.c.h.b16 %v352
        %v788 = vunpack.c.l.b16 %v353
        %v789 = vunpack.c.h.b16 %v353
        %v790 = vunpack.c.l.b16 %v354
        %v791 = vunpack.c.h.b16 %v354
        %v792 = vunpack.c.l.b16 %v355
        %v793 = vunpack.c.h.b16 %v355
        %v794 = vunpack.c.l.b16 %v356
        %v795 = vunpack.c.h.b16 %v356
        %v796 = vunpack.c.l.b16 %v357
        %v797 = vunpack.c.h.b16 %v357
        %v798 = vunpack.c.l.b16 %v358
        %v799 = vunpack.c.h.b16 %v358
        %v800 = vunpack.c.l.b16 %v359
        %v801 = vunpack.c.h.b16 %v359
        %v802 = vunpack.c.l.b16 %v360
        %v803 = vunpack.c.h.b16 %v360
        %v804 = vunpack.c.l.b16 %v361
        %v805 = vunpack.c.h.b16 %v361
        %v806 = vunpack.c.l.b16 %v362
        %v807 = vunpack.c.h.b16 %v362
        %v808 = vunpack.c.l.b16 %v363
        %v809 = vunpack.c.h.b16 %v363
        %v810 = vunpack.c.l.b16 %v364
        %v811 = vunpack.c.h.b16 %v364
        %v812 = vunpack.c.l.b16 %v365
        %v813 = vunpack.c.h.b16 %v365
        %v814 = vunpack.c.l.b16 %v366
        %v815 = vunpack.c.h.b16 %v366
        %v816 = vunpack.c.l.b16 %v367
        %v817 = vunpack.c.h.b16 %v367
        %v818 = vunpack.c.l.b16 %v368
        %v819 = vunpack.c.h.b16 %v368
        %v820 = vunpack.c.l.b16 %v369
        %v821 = vunpack.c.h.b16 %v369
        %v822 = vunpack.c.l.b16 %v370
        %v823 = vunpack.c.h.b16 %v370
        %v824 = vunpack.c.l.b16 %v371
        %v825 = vunpack.c.h.b16 %v371
        %v826 = vunpack.c.l.b16 %v372
        %v827 = vunpack.c.h.b16 %v372
        %v828 = vunpack.c.l.b16 %v373
        %v829 = vunpack.c.h.b16 %v373
        %v830 = vunpack.c.l.b16 %v374
        %v831 = vunpack.c.h.b16 %v374
        %v832 = vunpack.c.l.b16 %v375
        %v833 = vunpack.c.h.b16 %v375
        %v834 = vunpack.c.l.b16 %v376
        %v835 = vunpack.c.h.b16 %v376
        %v836 = vunpack.c.l.b16 %v377
        %v837 = vunpack.c.h.b16 %v377
        %v838 = vunpack.c.l.b16 %v378
        %v839 = vunpack.c.h.b16 %v378
        %v840 = vunpack.c.l.b16 %v379
        %v841 = vunpack.c.h.b16 %v379
        %v842 = vunpack.c.l.b16 %v380
        %v843 = vunpack.c.h.b16 %v380
        %v844 = vunpack.c.l.b16 %v381
        %v845 = vunpack.c.h.b16 %v381
        %v846 = vunpack.c.l.b16 %v382
        %v847 = vunpack.c.h.b16 %v382
        %v848 = vunpack.c.l.b16 %v383
        %v849 = vunpack.c.h.b16 %v383
        %v850 = vunpack.c.l.b16 %v384
        %v851 = vunpack.c.h.b16 %v384
        %v852 = vunpack.c.l.b16 %v385
        %v853 = vunpack.c.h.b16 %v385
        %v854 = vunpack.c.l.b16 %v386
        %v855 = vunpack.c.h.b16 %v386
        %v856 = vunpack.c.l.b16 %v387
        %v857 = vunpack.c.h.b16 %v387
        %v858 = vunpack.c.l.b16 %v388
        %v859 = vunpack.c.h.b16 %v388
        %v860 = vunpack.c.l.b16 %v389
        %v861 = vunpack.c.h.b16 %v389
        %v862 = vunpack.c.l.b16 %v390
        %v863 = vunpack.c.h.b16 %v390
        %v864 = vunpack.c.l.b16 %v391
        %v865 = vunpack.c.h.b16 %v391
        %v866 = vunpack.c.l.b16 %v392
        %v867 = vunpack.c.h.b16 %v392
        %v868 = vunpack.c.l.b16 %v393
        %v869 = vunpack.c.h.b16 %v393
        %v870 = vunpack.c.l.b16 %v394
        %v871 = vunpack.c.h.b16 %v394
        %v872 = vunpack.c.l.b16 %v395
        %v873 = vunpack.c.h.b16 %v395
        %v874 = vunpack.c.l.b16 %v396
        %v875 = vunpack.c.h.b16 %v396
        %v876 = vunpack.c.l.b16 %v397
        %v877 = vunpack.c.h.b16 %v397
        %v878 = vunpack.c.l.b16 %v398
        %v879 = vunpack.c.h.b16 %v398
        %v880 = vunpack.c.l.b16 %v399
        %v881 = vunpack.c.h.b16 %v399
        %v882 = vunpack.c.l.b16 %v400
        %v883 = vunpack.c.h.b16 %v400
        %v884 = vunpack.c.l.b16 %v401
        %v885 = vunpack.c.h.b16 %v401
        %v886 = vunpack.c.l.b16 %v402
        %v887 = vunpack.c.h.b16 %v402
        %v888 = vunpack.c.l.b16 %v403
        %v889 = vunpack.c.h.b16 %v403
        %v890 = vunpack.c.l.b16 %v404
        %v891 = vunpack.c.h.b16 %v404
        %v892 = vunpack.c.l.b16 %v405
        %v893 = vunpack.c.h.b16 %v405
        %v894 = vunpack.c.l.b16 %v406
        %v895 = vunpack.c.h.b16 %v406
        %v896 = vunpack.c.l.b16 %v407
        %v897 = vunpack.c.h.b16 %v407
        %v898 = vunpack.c.l.b16 %v408
        %v899 = vunpack.c.h.b16 %v408
        %v900 = vunpack.c.l.b16 %v409
        %v901 = vunpack.c.h.b16 %v409
        %v902 = vunpack.c.l.b16 %v410
        %v903 = vunpack.c.h.b16 %v410
        %v904 = vunpack.c.l.b16 %v411
        %v905 = vunpack.c.h.b16 %v411
        %v906 = vunpack.c.l.b16 %v412
        %v907 = vunpack.c.h.b16 %v412
        %v908 = vunpack.c.l.b16 %v413
        %v909 = vunpack.c.h.b16 %v413
        %v910 = vunpack.c.l.b16 %v414
        %v911 = vunpack.c.h.b16 %v414
        %v912 = vunpack.c.l.b16 %v415
        %v913 = vunpack.c.h.b16 %v415
        %v914 = vunpack.c.l.b16 %v416
        %v915 = vunpack.c.h.b16 %v416
        %v916 = vunpack.c.l.b16 %v417
        %v917 = vunpack.c.h.b16 %v417
        %v918 = vunpack.c.l.b16 %v418
        %v919 = vunpack.c.h.b16 %v418
        %v920 = vunpack.c.l.b16 %v419
        %v921 = vunpack.c.h.b16 %v419
        %v922 = vunpack.c.l.b16 %v420
        %v923 = vunpack.c.h.b16 %v420
        %v924 = vunpack.c.l.b16 %v421
        %v925 = vunpack.c.h.b16 %v421
        %v926 = vunpack.c.l.b16 %v422
        %v927 = vunpack.c.h.b16 %v422
        %v928 = vunpack.c.l.b16 %v423
        %v929 = vunpack.c.h.b16 %v423
        %v930 = vunpack.c.l.b16 %v424
        %v931 = vunpack.c.h.b16 %v424
        %v932 = vunpack.c.l.b16 %v425
        %v933 = vunpack.c.h.b16 %v425
        %v934 = vunpack.c.l.b16 %v426
        %v935 = vunpack.c.h.b16 %v426
        %v936 = vunpack.c.l.b16 %v427
        %v937 = vunpack.c.h.b16 %v427
        %v938 = vunpack.c.l.b16 %v428
        %v939 = vunpack.c.h.b16 %v428
        %v940 = vunpack.c.l.b16 %v429
        %v941 = vunpack.c.h.b16 %v429
        %v942 = vunpack.c.l.b16 %v430
        %v943 = vunpack.c.h.b16 %v430
        %v944 = vunpack.c.l.b16 %v431
        %v945 = vunpack.c.h.b16 %v431
        %v946 = vunpack.c.l.b16 %v432
        %v947 = vunpack.c.h.b16 %v432
        %v948 = vunpack.c.l.b16 %v433
        %v949 = vunpack.c.h.b16 %v433
        %v950 = vunpack.c.l.b16 %v434
        %v951 = vunpack.c.h.b16 %v434
        %v952 = vunpack.c.l.b16 %v435
        %v953 = vunpack.c.h.b16 %v435
        %v954 = vunpack.c.l.b16 %v436
        %v955 = vunpack.c.h.b16 %v436
        %v956 = vunpack.c.l.b16 %v437
        %v957 = vunpack.c.h.b16 %v437
        %v958 = vunpack.c.l.b16 %v438
        %v959 = vunpack.c.h.b16 %v438
        %v960 = vunpack.c.l.b16 %v439
        %v961 = vunpack.c.h.b16 %v439
        %v962 = vunpack.c.l.b16 %v440
        %v963 = vunpack.c.h.b16 %v440
        %v964 = vunpack.c.l.b16 %v441
        %v965 = vunpack.c.h.b16 %v441
        %v966 = vunpack.c.l.b16 %v442
        %v967 = vunpack.c.h.b16 %v442
        %v968 = vunpack.c.l.b16 %v443
        %v969 = vunpack.c.h.b16 %v443
        %v970 = vunpack.c.l.b16 %v444
        %v971 = vunpack.c.h.b16 %v444
        %v972 = vunpack.c.l.b16 %v445
        %v973 = vunpack.c.h.b16 %v445
        %v974 = vunpack.c.l.b16 %v446
        %v975 = vunpack.c.h.b16 %v446
        %v976 = vunpack.c.l.b16 %v447
        %v977 = vunpack.c.h.b16 %v447
        %v978 = vunpack.c.l.b16 %v448
        %v979 = vunpack.c.h.b16 %v448
        %v980 = vunpack.c.l.b16 %v449
        %v981 = vunpack.c.h.b16 %v449
        %v982 = vunpack.c.l.b16 %v450
        %v983 = vunpack.c.h.b16 %v450
        %v984 = vunpack.c.l.b16 %v451
        %v985 = vunpack.c.h.b16 %v451
        %v986 = vunpack.c.l.b16 %v452
        %v987 = vunpack.c.h.b16 %v452
        %v988 = vunpack.c.l.b16 %v453
        %v989 = vunpack.c.h.b16 %v453
        %v990 = vunpack.c.l.b16 %v454
        %v991 = vunpack.c.h.b16 %v454
        %v992 = vunpack.c.l.b16 %v455
        %v993 = vunpack.c.h.b16 %v455
        %v994 = vunpack.c.l.b16 %v456
        %v995 = vunpack.c.h.b16 %v456
        %v996 = vunpack.c.l.b16 %v457
        %v997 = vunpack.c.h.b16 %v457
        %v998 = vunpack.c.l.b16 %v458
        %v999 = vunpack.c.h.b16 %v458
        %v1000 = vunpack.c.l.b16 %v459
        %v1001 = vunpack.c.h.b16 %v459
        %v1002 = vunpack.c.l.b16 %v460
        %v1003 = vunpack.c.h.b16 %v460
        %v1004 = vunpack.c.l.b16 %v461
        %v1005 = vunpack.c.h.b16 %v461
        %v1006 = vunpack.c.l.b16 %v462
        %v1007 = vunpack.c.h.b16 %v462
        %v1008 = vunpack.c.l.b16 %v463
        %v1009 = vunpack.c.h.b16 %v463
        %v1010 = vunpack.c.l.b16 %v464
        %v1011 = vunpack.c.h.b16 %v464
        %v1012 = vunpack.c.l.b16 %v465
        %v1013 = vunpack.c.h.b16 %v465
        %v1014 = vunpack.c.l.b16 %v466
        %v1015 = vunpack.c.h.b16 %v466
        %v1016 = vunpack.c.l.b16 %v467
        %v1017 = vunpack.c.h.b16 %v467
        %v1018 = vunpack.c.l.b16 %v468
        %v1019 = vunpack.c.h.b16 %v468
        %v1020 = vunpack.c.l.b16 %v469
        %v1021 = vunpack.c.h.b16 %v469
        %v1022 = vunpack.c.l.b16 %v470
        %v1023 = vunpack.c.h.b16 %v470
        %v1024 = vunpack.c.l.b16 %v471
        %v1025 = vunpack.c.h.b16 %v471
        %v1026 = vunpack.c.l.b16 %v472
        %v1027 = vunpack.c.h.b16 %v472
        %v1028 = vunpack.c.l.b16 %v473
        %v1029 = vunpack.c.h.b16 %v473
        %v1030 = vunpack.c.l.b16 %v474
        %v1031 = vunpack.c.h.b16 %v474
        %v1032 = vunpack.c.l.b16 %v475
        %v1033 = vunpack.c.h.b16 %v475
        %v1034 = vunpack.c.l.b16 %v476
        %v1035 = vunpack.c.h.b16 %v476
        %v1036 = vunpack.c.l.b16 %v477
        %v1037 = vunpack.c.h.b16 %v477
        %v1038 = vunpack.c.l.b16 %v478
        %v1039 = vunpack.c.h.b16 %v478
        %v1040 = vunpack.c.l.b16 %v479
        %v1041 = vunpack.c.h.b16 %v479
        %v1042 = vunpack.c.l.b16 %v480
        %v1043 = vunpack.c.h.b16 %v480
        %v1044 = vunpack.c.l.b16 %v481
        %v1045 = vunpack.c.h.b16 %v481
        %v1046 = vunpack.c.l.b16 %v482
        %v1047 = vunpack.c.h.b16 %v482
        %v1048 = vunpack.c.l.b16 %v483
        %v1049 = vunpack.c.h.b16 %v483
        %v1050 = vunpack.c.l.b16 %v484
        %v1051 = vunpack.c.h.b16 %v484
        %v1052 = vunpack.c.l.b16 %v485
        %v1053 = vunpack.c.h.b16 %v485
        %v1054 = vunpack.c.l.b16 %v486
        %v1055 = vunpack.c.h.b16 %v486
        %v1056 = vunpack.c.l.b16 %v487
        %v1057 = vunpack.c.h.b16 %v487
        %v1058 = vunpack.c.l.b16 %v488
        %v1059 = vunpack.c.h.b16 %v488
        %v1060 = vunpack.c.l.b16 %v489
        %v1061 = vunpack.c.h.b16 %v489
        %v1062 = vunpack.c.l.b16 %v490
        %v1063 = vunpack.c.h.b16 %v490
        %v1064 = vunpack.c.l.b16 %v491
        %v1065 = vunpack.c.h.b16 %v491
        %v1066 = vunpack.c.l.b16 %v492
        %v1067 = vunpack.c.h.b16 %v492
        %v1068 = vunpack.c.l.b16 %v493
        %v1069 = vunpack.c.h.b16 %v493
        %v1070 = vunpack.c.l.b16 %v494
        %v1071 = vunpack.c.h.b16 %v494
        %v1072 = vunpack.c.l.b16 %v495
        %v1073 = vunpack.c.h.b16 %v495
        %v1074 = vunpack.c.l.b16 %v496
        %v1075 = vunpack.c.h.b16 %v496
        %v1076 = vunpack.c.l.b16 %v497
        %v1077 = vunpack.c.h.b16 %v497
        %v1078 = vunpack.c.l.b16 %v498
        %v1079 = vunpack.c.h.b16 %v498
        %v1080 = vunpack.c.l.b16 %v499
        %v1081 = vunpack.c.h.b16 %v499
        %v1082 = vunpack.c.l.b16 %v500
        %v1083 = vunpack.c.h.b16 %v500
        %v1084 = vunpack.c.l.b16 %v501
        %v1085 = vunpack.c.h.b16 %v501
        %v1086 = vunpack.c.l.b16 %v502
        %v1087 = vunpack.c.h.b16 %v502
        %v1088 = vunpack.c.l.b16 %v503
        %v1089 = vunpack.c.h.b16 %v503
        %v1090 = vunpack.c.l.b16 %v504
        %v1091 = vunpack.c.h.b16 %v504
        %v1092 = vunpack.c.l.b16 %v505
        %v1093 = vunpack.c.h.b16 %v505
        %v1094 = vunpack.c.l.b16 %v506
        %v1095 = vunpack.c.h.b16 %v506
        %v1096 = vunpack.c.l.b16 %v507
        %v1097 = vunpack.c.h.b16 %v507
        %v1098 = vunpack.c.l.b16 %v508
        %v1099 = vunpack.c.h.b16 %v508
        %v1100 = vunpack.c.l.b16 %v509
        %v1101 = vunpack.c.h.b16 %v509
        %v1102 = vunpack.c.l.b16 %v510
        %v1103 = vunpack.c.h.b16 %v510
        %v1104 = vunpack.c.l.b16 %v511
        %v1105 = vunpack.c.h.b16 %v511
        %v1106 = vunpack.c.l.b16 %v512
        %v1107 = vunpack.c.h.b16 %v512
        %v1108 = vunpack.c.l.b16 %v513
        %v1109 = vunpack.c.h.b16 %v513
        %v1110 = vunpack.c.l.b16 %v514
        %v1111 = vunpack.c.h.b16 %v514
        %v1112 = vunpack.c.l.b16 %v515
        %v1113 = vunpack.c.h.b16 %v515
        %v1114 = vunpack.c.l.b16 %v516
        %v1115 = vunpack.c.h.b16 %v516
        %v1116 = vunpack.c.l.b16 %v517
        %v1117 = vunpack.c.h.b16 %v517
        %v1118 = vunpack.c.l.b16 %v518
        %v1119 = vunpack.c.h.b16 %v518
        %v1120 = vunpack.c.l.b16 %v519
        %v1121 = vunpack.c.h.b16 %v519
        %v1122 = vunpack.c.l.b16 %v520
        %v1123 = vunpack.c.h.b16 %v520
        %v1124 = vunpack.c.l.b16 %v521
        %v1125 = vunpack.c.h.b16 %v521
        %v1126 = vunpack.c.l.b16 %v522
        %v1127 = vunpack.c.h.b16 %v522
        %v1128 = vunpack.c.l.b16 %v523
        %v1129 = vunpack.c.h.b16 %v523
        %v1130 = vunpack.c.l.b16 %v524
        %v1131 = vunpack.c.h.b16 %v524
        %v1132 = vunpack.c.l.b16 %v525
        %v1133 = vunpack.c.h.b16 %v525
        %v1134 = vunpack.c.l.b16 %v526
        %v1135 = vunpack.c.h.b16 %v526
        %v1136 = vunpack.c.l.b16 %v527
        %v1137 = vunpack.c.h.b16 %v527
        %v1138 = vpack.c.b16 %v750, %v746
        %v1139 = vpack.c.b16 %v751, %v747
        %v1140 = vpack.c.b16 %v752, %v748
        %v1141 = vpack.c.b16 %v753, %v749
        %v1142 = vpack.c.b16 %v758, %v754
        %v1143 = vpack.c.b16 %v759, %v755
        %v1144 = vpack.c.b16 %v760, %v756
        %v1145 = vpack.c.b16 %v761, %v757
        %v1146 = vpack.c.b16 %v766, %v762
        %v1147 = vpack.c.b16 %v767, %v763
        %v1148 = vpack.c.b16 %v768, %v764
        %v1149 = vpack.c.b16 %v769, %v765
        %v1150 = vpack.c.b16 %v774, %v770
        %v1151 = vpack.c.b16 %v775, %v771
        %v1152 = vpack.c.b16 %v776, %v772
        %v1153 = vpack.c.b16 %v777, %v773
        %v1154 = vpack.c.b16 %v782, %v778
        %v1155 = vpack.c.b16 %v783, %v779
        %v1156 = vpack.c.b16 %v784, %v780
        %v1157 = vpack.c.b16 %v785, %v781
        %v1158 = vpack.c.b16 %v790, %v786
        %v1159 = vpack.c.b16 %v791, %v787
        %v1160 = vpack.c.b16 %v792, %v788
        %v1161 = vpack.c.b16 %v793, %v789
        %v1162 = vpack.c.b16 %v798, %v794
        %v1163 = vpack.c.b16 %v799, %v795
        %v1164 = vpack.c.b16 %v800, %v796
        %v1165 = vpack.c.b16 %v801, %v797
        %v1166 = vpack.c.b16 %v806, %v802
        %v1167 = vpack.c.b16 %v807, %v803
        %v1168 = vpack.c.b16 %v808, %v804
        %v1169 = vpack.c.b16 %v809, %v805
        %v1170 = vpack.c.b16 %v814, %v810
        %v1171 = vpack.c.b16 %v815, %v811
        %v1172 = vpack.c.b16 %v816, %v812
        %v1173 = vpack.c.b16 %v817, %v813
        %v1174 = vpack.c.b16 %v822, %v818
        %v1175 = vpack.c.b16 %v823, %v819
        %v1176 = vpack.c.b16 %v824, %v820
        %v1177 = vpack.c.b16 %v825, %v821
        %v1178 = vpack.c.b16 %v830, %v826
        %v1179 = vpack.c.b16 %v831, %v827
        %v1180 = vpack.c.b16 %v832, %v828
        %v1181 = vpack.c.b16 %v833, %v829
        %v1182 = vpack.c.b16 %v838, %v834
        %v1183 = vpack.c.b16 %v839, %v835
        %v1184 = vpack.c.b16 %v840, %v836
        %v1185 = vpack.c.b16 %v841, %v837
        %v1186 = vpack.c.b16 %v846, %v842
        %v1187 = vpack.c.b16 %v847, %v843
        %v1188 = vpack.c.b16 %v848, %v844
        %v1189 = vpack.c.b16 %v849, %v845
        %v1190 = vpack.c.b16 %v854, %v850
        %v1191 = vpack.c.b16 %v855, %v851
        %v1192 = vpack.c.b16 %v856, %v852
        %v1193 = vpack.c.b16 %v857, %v853
        %v1194 = vpack.c.b16 %v862, %v858
        %v1195 = vpack.c.b16 %v863, %v859
        %v1196 = vpack.c.b16 %v864, %v860
        %v1197 = vpack.c.b16 %v865, %v861
        %v1198 = vpack.c.b16 %v870, %v866
        %v1199 = vpack.c.b16 %v871, %v867
        %v1200 = vpack.c.b16 %v872, %v868
        %v1201 = vpack.c.b16 %v873, %v869
        %v1202 = vpack.c.b16 %v878, %v874
        %v1203 = vpack.c.b16 %v879, %v875
        %v1204 = vpack.c.b16 %v880, %v876
        %v1205 = vpack.c.b16 %v881, %v877
        %v1206 = vpack.c.b16 %v886, %v882
        %v1207 = vpack.c.b16 %v887, %v883
        %v1208 = vpack.c.b16 %v888, %v884
        %v1209 = vpack.c.b16 %v889, %v885
        %v1210 = vpack.c.b16 %v894, %v890
        %v1211 = vpack.c.b16 %v895, %v891
        %v1212 = vpack.c.b16 %v896, %v892
        %v1213 = vpack.c.b16 %v897, %v893
        %v1214 = vpack.c.b16 %v902, %v898
        %v1215 = vpack.c.b16 %v903, %v899
        %v1216 = vpack.c.b16 %v904, %v900
        %v1217 = vpack.c.b16 %v905, %v901
        %v1218 = vpack.c.b16 %v910, %v906
        %v1219 = vpack.c.b16 %v911, %v907
        %v1220 = vpack.c.b16 %v912, %v908
        %v1221 = vpack.c.b16 %v913, %v909
        %v1222 = vpack.c.b16 %v918, %v914
        %v1223 = vpack.c.b16 %v919, %v915
        %v1224 = vpack.c.b16 %v920, %v916
        %v1225 = vpack.c.b16 %v921, %v917
        %v1226 = vpack.c.b16 %v926, %v922
        %v1227 = vpack.c.b16 %v927, %v923
        %v1228 = vpack.c.b16 %v928, %v924
        %v1229 = vpack.c.b16 %v929, %v925
        %v1230 = vpack.c.b16 %v934, %v930
        %v1231 = vpack.c.b16 %v935, %v931
        %v1232 = vpack.c.b16 %v936, %v932
        %v1233 = vpack.c.b16 %v937, %v933
        %v1234 = vpack.c.b16 %v942, %v938
        %v1235 = vpack.c.b16 %v943, %v939
        %v1236 = vpack.c.b16 %v944, %v940
        %v1237 = vpack.c.b16 %v945, %v941
        %v1238 = vpack.c.b16 %v950, %v946
        %v1239 = vpack.c.b16 %v951, %v947
        %v1240 = vpack.c.b16 %v952, %v948
        %v1241 = vpack.c.b16 %v953, %v949
        %v1242 = vpack.c.b16 %v958, %v954
        %v1243 = vpack.c.b16 %v959, %v955
        %v1244 = vpack.c.b16 %v960, %v956
        %v1245 = vpack.c.b16 %v961, %v957
        %v1246 = vpack.c.b16 %v966, %v962
        %v1247 = vpack.c.b16 %v967, %v963
        %v1248 = vpack.c.b16 %v968, %v964
        %v1249 = vpack.c.b16 %v969, %v965
        %v1250 = vpack.c.b16 %v974, %v970
        %v1251 = vpack.c.b16 %v975, %v971
        %v1252 = vpack.c.b16 %v976, %v972
        %v1253 = vpack.c.b16 %v977, %v973
        %v1254 = vpack.c.b16 %v982, %v978
        %v1255 = vpack.c.b16 %v983, %v979
        %v1256 = vpack.c.b16 %v984, %v980
        %v1257 = vpack.c.b16 %v985, %v981
        %v1258 = vpack.c.b16 %v990, %v986
        %v1259 = vpack.c.b16 %v991, %v987
        %v1260 = vpack.c.b16 %v992, %v988
        %v1261 = vpack.c.b16 %v993, %v989
        %v1262 = vpack.c.b16 %v998, %v994
        %v1263 = vpack.c.b16 %v999, %v995
        %v1264 = vpack.c.b16 %v1000, %v996
        %v1265 = vpack.c.b16 %v1001, %v997
        %v1266 = vpack.c.b16 %v1006, %v1002
        %v1267 = vpack.c.b16 %v1007, %v1003
        %v1268 = vpack.c.b16 %v1008, %v1004
        %v1269 = vpack.c.b16 %v1009, %v1005
        %v1270 = vpack.c.b16 %v1014, %v1010
        %v1271 = vpack.c.b16 %v1015, %v1011
        %v1272 = vpack.c.b16 %v1016, %v1012
        %v1273 = vpack.c.b16 %v1017, %v1013
        %v1274 = vpack.c.b16 %v1022, %v1018
        %v1275 = vpack.c.b16 %v1023, %v1019
        %v1276 = vpack.c.b16 %v1024, %v1020
        %v1277 = vpack.c.b16 %v1025, %v1021
        %v1278 = vpack.c.b16 %v1030, %v1026
        %v1279 = vpack.c.b16 %v1031, %v1027
        %v1280 = vpack.c.b16 %v1032, %v1028
        %v1281 = vpack.c.b16 %v1033, %v1029
        %v1282 = vpack.c.b16 %v1038, %v1034
        %v1283 = vpack.c.b16 %v1039, %v1035
        %v1284 = vpack.c.b16 %v1040, %v1036
        %v1285 = vpack.c.b16 %v1041, %v1037
        %v1286 = vpack.c.b16 %v1046, %v1042
        %v1287 = vpack.c.b16 %v1047, %v1043
        %v1288 = vpack.c.b16 %v1048, %v1044
        %v1289 = vpack.c.b16 %v1049, %v1045
        %v1290 = vpack.c.b16 %v1054, %v1050
        %v1291 = vpack.c.b16 %v1055, %v1051
        %v1292 = vpack.c.b16 %v1056, %v1052
        %v1293 = vpack.c.b16 %v1057, %v1053
        %v1294 = vpack.c.b16 %v1062, %v1058
        %v1295 = vpack.c.b16 %v1063, %v1059
        %v1296 = vpack.c.b16 %v1064, %v1060
        %v1297 = vpack.c.b16 %v1065, %v1061
        %v1298 = vpack.c.b16 %v1070, %v1066
        %v1299 = vpack.c.b16 %v1071, %v1067
        %v1300 = vpack.c.b16 %v1072, %v1068
        %v1301 = vpack.c.b16 %v1073, %v1069
        %v1302 = vpack.c.b16 %v1078, %v1074
        %v1303 = vpack.c.b16 %v1079, %v1075
        %v1304 = vpack.c.b16 %v1080, %v1076
        %v1305 = vpack.c.b16 %v1081, %v1077
        %v1306 = vpack.c.b16 %v1086, %v1082
        %v1307 = vpack.c.b16 %v1087, %v1083
        %v1308 = vpack.c.b16 %v1088, %v1084
        %v1309 = vpack.c.b16 %v1089, %v1085
        %v1310 = vpack.c.b16 %v1094, %v1090
        %v1311 = vpack.c.b16 %v1095, %v1091
        %v1312 = vpack.c.b16 %v1096, %v1092
        %v1313 = vpack.c.b16 %v1097, %v1093
        %v1314 = vpack.c.b16 %v1102, %v1098
        %v1315 = vpack.c.b16 %v1103, %v1099
        %v1316 = vpack.c.b16 %v1104, %v1100
        %v1317 = vpack.c.b16 %v1105, %v1101
        %v1318 = vpack.c.b16 %v1110, %v1106
        %v1319 = vpack.c.b16 %v1111, %v1107
        %v1320 = vpack.c.b16 %v1112, %v1108
        %v1321 = vpack.c.b16 %v1113, %v1109
        %v1322 = vpack.c.b16 %v1118, %v1114
        %v1323 = vpack.c.b16 %v1119, %v1115
        %v1324 = vpack.c.b16 %v1120, %v1116
        %v1325 = vpack.c.b16 %v1121, %v1117
        %v1326 = vpack.c.b16 %v1126, %v1122
        %v1327 = vpack.c.b16 %v1127, %v1123
        %v1328 = vpack.c.b16 %v1128, %v1124
        %v1329 = vpack.c.b16 %v1129, %v1125
        %v1330 = vpack.c.b16 %v1134, %v1130
        %v1331 = vpack.c.b16 %v1135, %v1131
        %v1332 = vpack.c.b16 %v1136, %v1132
        %v1333 = vpack.c.b16 %v1137, %v1133
        %vm1530 = vcmask 130048
        %v1532 = vsel %vm1530, %v331, 0
        %1534 = vmatprep.subr.bf16.mxu0 %v1167
        %1535 = vmatpush1.bf16.msra.mxu0 %v1166
        %1536 = vmatprep.subr.bf16.mxu0 %v1163
        %1537 = vmatpush1.bf16.msra.mxu0 %v1162
        %1538 = vmatprep.subr.bf16.mxu0 %v1159
        %1539 = vmatpush1.bf16.msra.mxu0 %v1158
        %1540 = vmatprep.subr.bf16.mxu0 %v1155
        %1541 = vmatpush1.bf16.msra.mxu0 %v1154
        %1542 = vmatprep.subr.bf16.mxu0 %v1151
        %1543 = vmatpush1.bf16.msra.mxu0 %v1150
        %1544 = vmatprep.subr.bf16.mxu0 %v1147
        %1545 = vmatpush1.bf16.msra.mxu0 %v1146
        %1546 = vmatprep.subr.bf16.mxu0 %v1143
        %1547 = vmatpush1.bf16.msra.mxu0 %v1142
        %1548 = vmatprep.subr.bf16.mxu0 %v1139
        %1549 = vmatpush1.bf16.msra.mxu0 %v1138
        %1550 = vmatprep.subr.bf16.mxu0 %v1199
        %1551 = vmatpush2.bf16.msra.mxu0 %v1198
        %1552 = vmatprep.subr.bf16.mxu0 %v1195
        %1553 = vmatpush2.bf16.msra.mxu0 %v1194
        %1554 = vmatprep.subr.bf16.mxu0 %v1191
        %1555 = vmatpush2.bf16.msra.mxu0 %v1190
        %1556 = vmatprep.subr.bf16.mxu0 %v1187
        %1557 = vmatpush2.bf16.msra.mxu0 %v1186
        %1558 = vmatprep.subr.bf16.mxu0 %v1183
        %1559 = vmatpush2.bf16.msra.mxu0 %v1182
        %1560 = vmatprep.subr.bf16.mxu0 %v1179
        %1561 = vmatpush2.bf16.msra.mxu0 %v1178
        %1562 = vmatprep.subr.bf16.mxu0 %v1175
        %1563 = vmatpush2.bf16.msra.mxu0 %v1174
        %1564 = vmatprep.subr.bf16.mxu0 %v1171
        %1565 = vmatpush2.bf16.msra.mxu0 %v1170
        %1566 = vmatprep.mubr.bf16.mxu0 %v326
        %1567 = vmatmul.mubr.bf16.gmra.mxu0 %v325
        %v1568 = vpop.f32.mrf.mxu0
        %v1569 = vadd.f32 %v533, %v1568
        %v1570 = vpop.f32.mrf.mxu0
        %v1571 = vadd.f32 %v537, %v1570
        %v1572 = vpop.f32.mrf.mxu0
        %v1573 = vadd.f32 %v533, %v1572
        %v1574 = vpop.f32.mrf.mxu0
        %v1575 = vadd.f32 %v537, %v1574
        %1576 = vdwg.mxu0
        %1577 = vmatprep.subr.bf16.mxu0 %v1231
        %1578 = vmatpush1.bf16.msra.mxu0 %v1230
        %1579 = vmatprep.subr.bf16.mxu0 %v1227
        %1580 = vmatpush1.bf16.msra.mxu0 %v1226
        %1581 = vmatprep.subr.bf16.mxu0 %v1223
        %1582 = vmatpush1.bf16.msra.mxu0 %v1222
        %1583 = vmatprep.subr.bf16.mxu0 %v1219
        %1584 = vmatpush1.bf16.msra.mxu0 %v1218
        %1585 = vmatprep.subr.bf16.mxu0 %v1215
        %1586 = vmatpush1.bf16.msra.mxu0 %v1214
        %1587 = vmatprep.subr.bf16.mxu0 %v1211
        %1588 = vmatpush1.bf16.msra.mxu0 %v1210
        %1589 = vmatprep.subr.bf16.mxu0 %v1207
        %1590 = vmatpush1.bf16.msra.mxu0 %v1206
        %1591 = vmatprep.subr.bf16.mxu0 %v1203
        %1592 = vmatpush1.bf16.msra.mxu0 %v1202
        %1593 = vmatprep.subr.bf16.mxu0 %v1263
        %1594 = vmatpush2.bf16.msra.mxu0 %v1262
        %1595 = vmatprep.subr.bf16.mxu0 %v1259
        %1596 = vmatpush2.bf16.msra.mxu0 %v1258
        %1597 = vmatprep.subr.bf16.mxu0 %v1255
        %1598 = vmatpush2.bf16.msra.mxu0 %v1254
        %1599 = vmatprep.subr.bf16.mxu0 %v1251
        %1600 = vmatpush2.bf16.msra.mxu0 %v1250
        %1601 = vmatprep.subr.bf16.mxu0 %v1247
        %1602 = vmatpush2.bf16.msra.mxu0 %v1246
        %1603 = vmatprep.subr.bf16.mxu0 %v1243
        %1604 = vmatpush2.bf16.msra.mxu0 %v1242
        %1605 = vmatprep.subr.bf16.mxu0 %v1239
        %1606 = vmatpush2.bf16.msra.mxu0 %v1238
        %1607 = vmatprep.subr.bf16.mxu0 %v1235
        %1608 = vmatpush2.bf16.msra.mxu0 %v1234
        %1609 = vmatprep.mubr.bf16.mxu0 %v328
        %1610 = vmatmul.mubr.bf16.gmra.mxu0 %v327
        %v1611 = vpop.f32.mrf.mxu0
        %v1612 = vadd.f32 %v1569, %v1611
        %v1613 = vpop.f32.mrf.mxu0
        %v1614 = vadd.f32 %v1571, %v1613
        %v1615 = vpop.f32.mrf.mxu0
        %v1616 = vadd.f32 %v1573, %v1615
        %v1617 = vpop.f32.mrf.mxu0
        %v1618 = vadd.f32 %v1575, %v1617
        %1619 = vdwg.mxu0
        %1620 = vmatprep.subr.bf16.mxu0 %v1295
        %1621 = vmatpush1.bf16.msra.mxu0 %v1294
        %1622 = vmatprep.subr.bf16.mxu0 %v1291
        %1623 = vmatpush1.bf16.msra.mxu0 %v1290
        %1624 = vmatprep.subr.bf16.mxu0 %v1287
        %1625 = vmatpush1.bf16.msra.mxu0 %v1286
        %1626 = vmatprep.subr.bf16.mxu0 %v1283
        %1627 = vmatpush1.bf16.msra.mxu0 %v1282
        %1628 = vmatprep.subr.bf16.mxu0 %v1279
        %1629 = vmatpush1.bf16.msra.mxu0 %v1278
        %1630 = vmatprep.subr.bf16.mxu0 %v1275
        %1631 = vmatpush1.bf16.msra.mxu0 %v1274
        %1632 = vmatprep.subr.bf16.mxu0 %v1271
        %1633 = vmatpush1.bf16.msra.mxu0 %v1270
        %1634 = vmatprep.subr.bf16.mxu0 %v1267
        %1635 = vmatpush1.bf16.msra.mxu0 %v1266
        %1636 = vmatprep.subr.bf16.mxu0 %v1327
        %1637 = vmatpush2.bf16.msra.mxu0 %v1326
        %1638 = vmatprep.subr.bf16.mxu0 %v1323
        %1639 = vmatpush2.bf16.msra.mxu0 %v1322
        %1640 = vmatprep.subr.bf16.mxu0 %v1319
        %1641 = vmatpush2.bf16.msra.mxu0 %v1318
        %1642 = vmatprep.subr.bf16.mxu0 %v1315
        %1643 = vmatpush2.bf16.msra.mxu0 %v1314
        %1644 = vmatprep.subr.bf16.mxu0 %v1311
        %1645 = vmatpush2.bf16.msra.mxu0 %v1310
        %1646 = vmatprep.subr.bf16.mxu0 %v1307
        %1647 = vmatpush2.bf16.msra.mxu0 %v1306
        %1648 = vmatprep.subr.bf16.mxu0 %v1303
        %1649 = vmatpush2.bf16.msra.mxu0 %v1302
        %1650 = vmatprep.subr.bf16.mxu0 %v1299
        %1651 = vmatpush2.bf16.msra.mxu0 %v1298
        %1652 = vmatprep.mubr.bf16.mxu0 %v330
        %1653 = vmatmul.mubr.bf16.gmra.mxu0 %v329
        %v1654 = vpop.f32.mrf.mxu0
        %v1655 = vadd.f32 %v1612, %v1654
        %v1656 = vpop.f32.mrf.mxu0
        %v1657 = vadd.f32 %v1614, %v1656
        %v1658 = vpop.f32.mrf.mxu0
        %v1659 = vadd.f32 %v1616, %v1658
        %v1660 = vpop.f32.mrf.mxu0
        %v1661 = vadd.f32 %v1618, %v1660
        %1662 = vdwg.mxu0
        %1663 = vmatprep.subr.bf16.mxu0 0
        %1664 = vmatpush1.bf16.msra.mxu0 0
        %1665 = vmatprep.subr.bf16.mxu0 0
        %1666 = vmatpush1.bf16.msra.mxu0 0
        %1667 = vmatprep.subr.bf16.mxu0 0
        %1668 = vmatpush1.bf16.msra.mxu0 0
        %1669 = vmatprep.subr.bf16.mxu0 0
        %1670 = vmatpush1.bf16.msra.mxu0 0
        %1671 = vmatprep.subr.bf16.mxu0 0
        %1672 = vmatpush1.bf16.msra.mxu0 0
        %1673 = vmatprep.subr.bf16.mxu0 0
        %1674 = vmatpush1.bf16.msra.mxu0 0
        %1675 = vmatprep.subr.bf16.mxu0 0
        %1676 = vmatpush1.bf16.msra.mxu0 0
        %1677 = vmatprep.subr.bf16.mxu0 %v1331
        %1678 = vmatpush1.bf16.msra.mxu0 %v1330
        %1679 = vmatprep.subr.bf16.mxu0 0
        %1680 = vmatpush2.bf16.msra.mxu0 0
        %1681 = vmatprep.subr.bf16.mxu0 0
        %1682 = vmatpush2.bf16.msra.mxu0 0
        %1683 = vmatprep.subr.bf16.mxu0 0
        %1684 = vmatpush2.bf16.msra.mxu0 0
        %1685 = vmatprep.subr.bf16.mxu0 0
        %1686 = vmatpush2.bf16.msra.mxu0 0
        %1687 = vmatprep.subr.bf16.mxu0 0
        %1688 = vmatpush2.bf16.msra.mxu0 0
        %1689 = vmatprep.subr.bf16.mxu0 0
        %1690 = vmatpush2.bf16.msra.mxu0 0
        %1691 = vmatprep.subr.bf16.mxu0 0
        %1692 = vmatpush2.bf16.msra.mxu0 0
        %1693 = vmatprep.subr.bf16.mxu0 0
        %1694 = vmatpush2.bf16.msra.mxu0 0
        %1695 = vmatprep.mubr.bf16.mxu0 0
        %1696 = vmatmul.mubr.bf16.gmra.mxu0 %v1532
        %v1697 = vpop.f32.mrf.mxu0
        %v1698 = vadd.f32 %v1655, %v1697
        %v1699 = vpop.f32.mrf.mxu0
        %v1700 = vadd.f32 %v1657, %v1699
        %v1701 = vpop.f32.mrf.mxu0
        %v1702 = vadd.f32 %v1659, %v1701
        %v1703 = vpop.f32.mrf.mxu0
        %v1704 = vadd.f32 %v1661, %v1703
        %1705 = vdwg.mxu0
        %1706 = vmatprep.subr.bf16.mxu0 %v1169
        %1707 = vmatpush1.bf16.msra.mxu0 %v1168
        %1708 = vmatprep.subr.bf16.mxu0 %v1165
        %1709 = vmatpush1.bf16.msra.mxu0 %v1164
        %1710 = vmatprep.subr.bf16.mxu0 %v1161
        %1711 = vmatpush1.bf16.msra.mxu0 %v1160
        %1712 = vmatprep.subr.bf16.mxu0 %v1157
        %1713 = vmatpush1.bf16.msra.mxu0 %v1156
        %1714 = vmatprep.subr.bf16.mxu0 %v1153
        %1715 = vmatpush1.bf16.msra.mxu0 %v1152
        %1716 = vmatprep.subr.bf16.mxu0 %v1149
        %1717 = vmatpush1.bf16.msra.mxu0 %v1148
        %1718 = vmatprep.subr.bf16.mxu0 %v1145
        %1719 = vmatpush1.bf16.msra.mxu0 %v1144
        %1720 = vmatprep.subr.bf16.mxu0 %v1141
        %1721 = vmatpush1.bf16.msra.mxu0 %v1140
        %1722 = vmatprep.subr.bf16.mxu0 %v1201
        %1723 = vmatpush2.bf16.msra.mxu0 %v1200
        %1724 = vmatprep.subr.bf16.mxu0 %v1197
        %1725 = vmatpush2.bf16.msra.mxu0 %v1196
        %1726 = vmatprep.subr.bf16.mxu0 %v1193
        %1727 = vmatpush2.bf16.msra.mxu0 %v1192
        %1728 = vmatprep.subr.bf16.mxu0 %v1189
        %1729 = vmatpush2.bf16.msra.mxu0 %v1188
        %1730 = vmatprep.subr.bf16.mxu0 %v1185
        %1731 = vmatpush2.bf16.msra.mxu0 %v1184
        %1732 = vmatprep.subr.bf16.mxu0 %v1181
        %1733 = vmatpush2.bf16.msra.mxu0 %v1180
        %1734 = vmatprep.subr.bf16.mxu0 %v1177
        %1735 = vmatpush2.bf16.msra.mxu0 %v1176
        %1736 = vmatprep.subr.bf16.mxu0 %v1173
        %1737 = vmatpush2.bf16.msra.mxu0 %v1172
        %1738 = vmatprep.mubr.bf16.mxu0 %v326
        %1739 = vmatmul.mubr.bf16.gmra.mxu0 %v325
        %v1740 = vpop.f32.mrf.mxu0
        %v1741 = vadd.f32 %v541, %v1740
        %v1742 = vpop.f32.mrf.mxu0
        %v1743 = vadd.f32 %v545, %v1742
        %v1744 = vpop.f32.mrf.mxu0
        %v1745 = vadd.f32 %v541, %v1744
        %v1746 = vpop.f32.mrf.mxu0
        %v1747 = vadd.f32 %v545, %v1746
        %1748 = vdwg.mxu0
        %1749 = vmatprep.subr.bf16.mxu0 %v1233
        %1750 = vmatpush1.bf16.msra.mxu0 %v1232
        %1751 = vmatprep.subr.bf16.mxu0 %v1229
        %1752 = vmatpush1.bf16.msra.mxu0 %v1228
        %1753 = vmatprep.subr.bf16.mxu0 %v1225
        %1754 = vmatpush1.bf16.msra.mxu0 %v1224
        %1755 = vmatprep.subr.bf16.mxu0 %v1221
        %1756 = vmatpush1.bf16.msra.mxu0 %v1220
        %1757 = vmatprep.subr.bf16.mxu0 %v1217
        %1758 = vmatpush1.bf16.msra.mxu0 %v1216
        %1759 = vmatprep.subr.bf16.mxu0 %v1213
        %1760 = vmatpush1.bf16.msra.mxu0 %v1212
        %1761 = vmatprep.subr.bf16.mxu0 %v1209
        %1762 = vmatpush1.bf16.msra.mxu0 %v1208
        %1763 = vmatprep.subr.bf16.mxu0 %v1205
        %1764 = vmatpush1.bf16.msra.mxu0 %v1204
        %1765 = vmatprep.subr.bf16.mxu0 %v1265
        %1766 = vmatpush2.bf16.msra.mxu0 %v1264
        %1767 = vmatprep.subr.bf16.mxu0 %v1261
        %1768 = vmatpush2.bf16.msra.mxu0 %v1260
        %1769 = vmatprep.subr.bf16.mxu0 %v1257
        %1770 = vmatpush2.bf16.msra.mxu0 %v1256
        %1771 = vmatprep.subr.bf16.mxu0 %v1253
        %1772 = vmatpush2.bf16.msra.mxu0 %v1252
        %1773 = vmatprep.subr.bf16.mxu0 %v1249
        %1774 = vmatpush2.bf16.msra.mxu0 %v1248
        %1775 = vmatprep.subr.bf16.mxu0 %v1245
        %1776 = vmatpush2.bf16.msra.mxu0 %v1244
        %1777 = vmatprep.subr.bf16.mxu0 %v1241
        %1778 = vmatpush2.bf16.msra.mxu0 %v1240
        %1779 = vmatprep.subr.bf16.mxu0 %v1237
        %1780 = vmatpush2.bf16.msra.mxu0 %v1236
        %1781 = vmatprep.mubr.bf16.mxu0 %v328
        %1782 = vmatmul.mubr.bf16.gmra.mxu0 %v327
        %v1783 = vpop.f32.mrf.mxu0
        %v1784 = vadd.f32 %v1741, %v1783
        %v1785 = vpop.f32.mrf.mxu0
        %v1786 = vadd.f32 %v1743, %v1785
        %v1787 = vpop.f32.mrf.mxu0
        %v1788 = vadd.f32 %v1745, %v1787
        %v1789 = vpop.f32.mrf.mxu0
        %v1790 = vadd.f32 %v1747, %v1789
        %1791 = vdwg.mxu0
        %1792 = vmatprep.subr.bf16.mxu0 %v1297
        %1793 = vmatpush1.bf16.msra.mxu0 %v1296
        %1794 = vmatprep.subr.bf16.mxu0 %v1293
        %1795 = vmatpush1.bf16.msra.mxu0 %v1292
        %1796 = vmatprep.subr.bf16.mxu0 %v1289
        %1797 = vmatpush1.bf16.msra.mxu0 %v1288
        %1798 = vmatprep.subr.bf16.mxu0 %v1285
        %1799 = vmatpush1.bf16.msra.mxu0 %v1284
        %1800 = vmatprep.subr.bf16.mxu0 %v1281
        %1801 = vmatpush1.bf16.msra.mxu0 %v1280
        %1802 = vmatprep.subr.bf16.mxu0 %v1277
        %1803 = vmatpush1.bf16.msra.mxu0 %v1276
        %1804 = vmatprep.subr.bf16.mxu0 %v1273
        %1805 = vmatpush1.bf16.msra.mxu0 %v1272
        %1806 = vmatprep.subr.bf16.mxu0 %v1269
        %1807 = vmatpush1.bf16.msra.mxu0 %v1268
        %1808 = vmatprep.subr.bf16.mxu0 %v1329
        %1809 = vmatpush2.bf16.msra.mxu0 %v1328
        %1810 = vmatprep.subr.bf16.mxu0 %v1325
        %1811 = vmatpush2.bf16.msra.mxu0 %v1324
        %1812 = vmatprep.subr.bf16.mxu0 %v1321
        %1813 = vmatpush2.bf16.msra.mxu0 %v1320
        %1814 = vmatprep.subr.bf16.mxu0 %v1317
        %1815 = vmatpush2.bf16.msra.mxu0 %v1316
        %1816 = vmatprep.subr.bf16.mxu0 %v1313
        %1817 = vmatpush2.bf16.msra.mxu0 %v1312
        %1818 = vmatprep.subr.bf16.mxu0 %v1309
        %1819 = vmatpush2.bf16.msra.mxu0 %v1308
        %1820 = vmatprep.subr.bf16.mxu0 %v1305
        %1821 = vmatpush2.bf16.msra.mxu0 %v1304
        %1822 = vmatprep.subr.bf16.mxu0 %v1301
        %1823 = vmatpush2.bf16.msra.mxu0 %v1300
        %1824 = vmatprep.mubr.bf16.mxu0 %v330
        %1825 = vmatmul.mubr.bf16.gmra.mxu0 %v329
        %v1826 = vpop.f32.mrf.mxu0
        %v1827 = vadd.f32 %v1784, %v1826
        %v1828 = vpop.f32.mrf.mxu0
        %v1829 = vadd.f32 %v1786, %v1828
        %v1830 = vpop.f32.mrf.mxu0
        %v1831 = vadd.f32 %v1788, %v1830
        %v1832 = vpop.f32.mrf.mxu0
        %v1833 = vadd.f32 %v1790, %v1832
        %1834 = vdwg.mxu0
        %1835 = vmatprep.subr.bf16.mxu0 0
        %1836 = vmatpush1.bf16.msra.mxu0 0
        %1837 = vmatprep.subr.bf16.mxu0 0
        %1838 = vmatpush1.bf16.msra.mxu0 0
        %1839 = vmatprep.subr.bf16.mxu0 0
        %1840 = vmatpush1.bf16.msra.mxu0 0
        %1841 = vmatprep.subr.bf16.mxu0 0
        %1842 = vmatpush1.bf16.msra.mxu0 0
        %1843 = vmatprep.subr.bf16.mxu0 0
        %1844 = vmatpush1.bf16.msra.mxu0 0
        %1845 = vmatprep.subr.bf16.mxu0 0
        %1846 = vmatpush1.bf16.msra.mxu0 0
        %1847 = vmatprep.subr.bf16.mxu0 0
        %1848 = vmatpush1.bf16.msra.mxu0 0
        %1849 = vmatprep.subr.bf16.mxu0 %v1333
        %1850 = vmatpush1.bf16.msra.mxu0 %v1332
        %1851 = vmatprep.subr.bf16.mxu0 0
        %1852 = vmatpush2.bf16.msra.mxu0 0
        %1853 = vmatprep.subr.bf16.mxu0 0
        %1854 = vmatpush2.bf16.msra.mxu0 0
        %1855 = vmatprep.subr.bf16.mxu0 0
        %1856 = vmatpush2.bf16.msra.mxu0 0
        %1857 = vmatprep.subr.bf16.mxu0 0
        %1858 = vmatpush2.bf16.msra.mxu0 0
        %1859 = vmatprep.subr.bf16.mxu0 0
        %1860 = vmatpush2.bf16.msra.mxu0 0
        %1861 = vmatprep.subr.bf16.mxu0 0
        %1862 = vmatpush2.bf16.msra.mxu0 0
        %1863 = vmatprep.subr.bf16.mxu0 0
        %1864 = vmatpush2.bf16.msra.mxu0 0
        %1865 = vmatprep.subr.bf16.mxu0 0
        %1866 = vmatpush2.bf16.msra.mxu0 0
        %1867 = vmatprep.mubr.bf16.mxu0 0
        %1868 = vmatmul.mubr.bf16.gmra.mxu0 %v1532
        %v1869 = vpop.f32.mrf.mxu0
        %v1870 = vadd.f32 %v1827, %v1869
        %v1871 = vpop.f32.mrf.mxu0
        %v1872 = vadd.f32 %v1829, %v1871
        %v1873 = vpop.f32.mrf.mxu0
        %v1874 = vadd.f32 %v1831, %v1873
        %v1875 = vpop.f32.mrf.mxu0
        %v1876 = vadd.f32 %v1833, %v1875
        %1877 = vdwg.mxu0
        %vm1878 = vcmp.gt.f32.partialorder %v1698, 0.0
        %vm1879 = vcmp.gt.f32.partialorder %v1700, 0.0
        %vm1880 = vcmp.gt.f32.partialorder %v1870, 0.0
        %vm1881 = vcmp.gt.f32.partialorder %v1872, 0.0
        %vm1882 = vcmp.gt.f32.partialorder %v1702, 0.0
        %vm1883 = vcmp.gt.f32.partialorder %v1704, 0.0
        %vm1884 = vcmp.gt.f32.partialorder %v1874, 0.0
        %vm1885 = vcmp.gt.f32.partialorder %v1876, 0.0
        %v1886 = vmul.f32 %v1698, 0.2
        %v1887 = vmul.f32 %v1700, 0.2
        %v1888 = vmul.f32 %v1870, 0.2
        %v1889 = vmul.f32 %v1872, 0.2
        %v1890 = vmul.f32 %v1702, 0.2
        %v1891 = vmul.f32 %v1704, 0.2
        %v1892 = vmul.f32 %v1874, 0.2
        %v1893 = vmul.f32 %v1876, 0.2
        %v1894 = vsel %vm1878, %v1698, %v1886
        %v1895 = vsel %vm1879, %v1700, %v1887
        %v1896 = vsel %vm1880, %v1870, %v1888
        %v1897 = vsel %vm1881, %v1872, %v1889
        %v1898 = vsel %vm1882, %v1702, %v1890
        %v1899 = vsel %vm1883, %v1704, %v1891
        %v1900 = vsel %vm1884, %v1874, %v1892
        %v1901 = vsel %vm1885, %v1876, %v1893
        %v1902 = vpack.c.bf16 %v1898, %v1894
        %v1903 = vpack.c.bf16 %v1899, %v1895
        %v1904 = vpack.c.bf16 %v1900, %v1896
        %v1905 = vpack.c.bf16 %v1901, %v1897
        %v1906 = vld [vmem:[%s3] sm:$0xff]
        %v1907 = vld [vmem:[%s3 + $0x8] sm:$0xff]
        %v1908 = vld [vmem:[%s3 + $0x10] sm:$0xff]
        %v1909 = vld [vmem:[%s3 + $0x18] sm:$0xff]
        %v1910 = vld [vmem:[%s3 + $0x20] sm:$0xff]
        %v1911 = vld [vmem:[%s3 + $0x28] sm:$0xff]
        %v1912 = vld [vmem:[%s3 + $0x30] sm:$0xff]
        %v1913 = vld [vmem:[%s3 + $0x38] sm:$0xff]
        %v1914 = vld [vmem:[%s3 + $0x40] sm:$0xff]
        %v1915 = vld [vmem:[%s3 + $0x48] sm:$0xff]
        %v1916 = vld [vmem:[%s3 + $0x50] sm:$0xff]
        %v1917 = vld [vmem:[%s3 + $0x58] sm:$0xff]
        %v1918 = vld [vmem:[%s3 + $0x60] sm:$0xff]
        %v1919 = vld [vmem:[%s3 + $0x68] sm:$0xff]
        %v1920 = vld [vmem:[%s3 + $0x70] sm:$0xff]
        %v1921 = vld [vmem:[%s3 + $0x78] sm:$0xff]
        %v1922 = vld [vmem:[%s3 + $0x80] sm:$0xff]
        %v1923 = vld [vmem:[%s3 + $0x88] sm:$0xff]
        %v1924 = vld [vmem:[%s3 + $0x90] sm:$0xff]
        %v1925 = vld [vmem:[%s3 + $0x98] sm:$0xff]
        %v1926 = vld [vmem:[%s3 + $0xa0] sm:$0xff]
        %v1927 = vld [vmem:[%s3 + $0xa8] sm:$0xff]
        %v1928 = vld [vmem:[%s3 + $0xb0] sm:$0xff]
        %v1929 = vld [vmem:[%s3 + $0xb8] sm:$0xff]
        %v1930 = vld [vmem:[%s3 + $0xc0] sm:$0xff]
        %v1931 = vld [vmem:[%s3 + $0xc8] sm:$0xff]
        %v1932 = vld [vmem:[%s3 + $0xd0] sm:$0xff]
        %v1933 = vld [vmem:[%s3 + $0xd8] sm:$0xff]
        %v1934 = vld [vmem:[%s3 + $0xe0] sm:$0xff]
        %v1935 = vld [vmem:[%s3 + $0xe8] sm:$0xff]
        %v1936 = vld [vmem:[%s3 + $0xf0] sm:$0xff]
        %v1937 = vld [vmem:[%s3 + $0xf8] sm:$0xff]
        %v1938 = vld [vmem:[%s3 + $0x100] sm:$0xff]
        %v1939 = vld [vmem:[%s3 + $0x108] sm:$0xff]
        %v1940 = vld [vmem:[%s3 + $0x110] sm:$0xff]
        %v1941 = vld [vmem:[%s3 + $0x118] sm:$0xff]
        %v1942 = vld [vmem:[%s3 + $0x120] sm:$0xff]
        %v1943 = vld [vmem:[%s3 + $0x128] sm:$0xff]
        %v1944 = vld [vmem:[%s3 + $0x130] sm:$0xff]
        %v1945 = vld [vmem:[%s3 + $0x138] sm:$0xff]
        %v1946 = vld [vmem:[%s3 + $0x140] sm:$0xff]
        %v1947 = vld [vmem:[%s3 + $0x148] sm:$0xff]
        %v1948 = vld [vmem:[%s3 + $0x150] sm:$0xff]
        %v1949 = vld [vmem:[%s3 + $0x158] sm:$0xff]
        %v1950 = vld [vmem:[%s3 + $0x160] sm:$0xff]
        %v1951 = vld [vmem:[%s3 + $0x168] sm:$0xff]
        %v1952 = vld [vmem:[%s3 + $0x170] sm:$0xff]
        %v1953 = vld [vmem:[%s3 + $0x178] sm:$0xff]
        %v1954 = vld [vmem:[%s3 + $0x180] sm:$0xff]
        %v1955 = vld [vmem:[%s3 + $0x188] sm:$0xff]
        %v1956 = vld [vmem:[%s3 + $0x190] sm:$0xff]
        %v1957 = vld [vmem:[%s3 + $0x198] sm:$0xff]
        %v1958 = vld [vmem:[%s3 + $0x1a0] sm:$0xff]
        %v1959 = vld [vmem:[%s3 + $0x1a8] sm:$0xff]
        %v1960 = vld [vmem:[%s3 + $0x1b0] sm:$0xff]
        %v1961 = vld [vmem:[%s3 + $0x1b8] sm:$0xff]
        %v1962 = vld [vmem:[%s3 + $0x1c0] sm:$0xff]
        %v1963 = vld [vmem:[%s3 + $0x1c8] sm:$0xff]
        %v1964 = vld [vmem:[%s3 + $0x1d0] sm:$0xff]
        %v1965 = vld [vmem:[%s3 + $0x1d8] sm:$0xff]
        %v1966 = vld [vmem:[%s3 + $0x1e0] sm:$0xff]
        %v1967 = vld [vmem:[%s3 + $0x1e8] sm:$0xff]
        %v1968 = vld [vmem:[%s3 + $0x1f0] sm:$0xff]
        %v1969 = vld [vmem:[%s3 + $0x1f8] sm:$0xff]
        %v1970 = vld [vmem:[%s4] sm:$0x3]
        %v1972 = vlaneseq
        %v1973 = vshrl.u32 %v1972, 7
        %v1974 = vsub.s32 0, %v1973
        %v1975 = vrot.slane %v1970, %v1974
        %v1976 = vlaneseq
        %v1977 = vshrl.u32 %v1976, 7
        %v1978 = vsub.s32 1, %v1977
        %v1979 = vrot.slane %v1970, %v1978
        %v2046 = vunpack.c.l.b16 %v1906
        %v2047 = vunpack.c.h.b16 %v1906
        %v2048 = vunpack.c.l.b16 %v1907
        %v2049 = vunpack.c.h.b16 %v1907
        %v2050 = vunpack.c.l.b16 %v1908
        %v2051 = vunpack.c.h.b16 %v1908
        %v2052 = vunpack.c.l.b16 %v1909
        %v2053 = vunpack.c.h.b16 %v1909
        %v2054 = vunpack.c.l.b16 %v1910
        %v2055 = vunpack.c.h.b16 %v1910
        %v2056 = vunpack.c.l.b16 %v1911
        %v2057 = vunpack.c.h.b16 %v1911
        %v2058 = vunpack.c.l.b16 %v1912
        %v2059 = vunpack.c.h.b16 %v1912
        %v2060 = vunpack.c.l.b16 %v1913
        %v2061 = vunpack.c.h.b16 %v1913
        %v2062 = vunpack.c.l.b16 %v1914
        %v2063 = vunpack.c.h.b16 %v1914
        %v2064 = vunpack.c.l.b16 %v1915
        %v2065 = vunpack.c.h.b16 %v1915
        %v2066 = vunpack.c.l.b16 %v1916
        %v2067 = vunpack.c.h.b16 %v1916
        %v2068 = vunpack.c.l.b16 %v1917
        %v2069 = vunpack.c.h.b16 %v1917
        %v2070 = vunpack.c.l.b16 %v1918
        %v2071 = vunpack.c.h.b16 %v1918
        %v2072 = vunpack.c.l.b16 %v1919
        %v2073 = vunpack.c.h.b16 %v1919
        %v2074 = vunpack.c.l.b16 %v1920
        %v2075 = vunpack.c.h.b16 %v1920
        %v2076 = vunpack.c.l.b16 %v1921
        %v2077 = vunpack.c.h.b16 %v1921
        %v2078 = vunpack.c.l.b16 %v1922
        %v2079 = vunpack.c.h.b16 %v1922
        %v2080 = vunpack.c.l.b16 %v1923
        %v2081 = vunpack.c.h.b16 %v1923
        %v2082 = vunpack.c.l.b16 %v1924
        %v2083 = vunpack.c.h.b16 %v1924
        %v2084 = vunpack.c.l.b16 %v1925
        %v2085 = vunpack.c.h.b16 %v1925
        %v2086 = vunpack.c.l.b16 %v1926
        %v2087 = vunpack.c.h.b16 %v1926
        %v2088 = vunpack.c.l.b16 %v1927
        %v2089 = vunpack.c.h.b16 %v1927
        %v2090 = vunpack.c.l.b16 %v1928
        %v2091 = vunpack.c.h.b16 %v1928
        %v2092 = vunpack.c.l.b16 %v1929
        %v2093 = vunpack.c.h.b16 %v1929
        %v2094 = vunpack.c.l.b16 %v1930
        %v2095 = vunpack.c.h.b16 %v1930
        %v2096 = vunpack.c.l.b16 %v1931
        %v2097 = vunpack.c.h.b16 %v1931
        %v2098 = vunpack.c.l.b16 %v1932
        %v2099 = vunpack.c.h.b16 %v1932
        %v2100 = vunpack.c.l.b16 %v1933
        %v2101 = vunpack.c.h.b16 %v1933
        %v2102 = vunpack.c.l.b16 %v1934
        %v2103 = vunpack.c.h.b16 %v1934
        %v2104 = vunpack.c.l.b16 %v1935
        %v2105 = vunpack.c.h.b16 %v1935
        %v2106 = vunpack.c.l.b16 %v1936
        %v2107 = vunpack.c.h.b16 %v1936
        %v2108 = vunpack.c.l.b16 %v1937
        %v2109 = vunpack.c.h.b16 %v1937
        %v2110 = vunpack.c.l.b16 %v1938
        %v2111 = vunpack.c.h.b16 %v1938
        %v2112 = vunpack.c.l.b16 %v1939
        %v2113 = vunpack.c.h.b16 %v1939
        %v2114 = vunpack.c.l.b16 %v1940
        %v2115 = vunpack.c.h.b16 %v1940
        %v2116 = vunpack.c.l.b16 %v1941
        %v2117 = vunpack.c.h.b16 %v1941
        %v2118 = vunpack.c.l.b16 %v1942
        %v2119 = vunpack.c.h.b16 %v1942
        %v2120 = vunpack.c.l.b16 %v1943
        %v2121 = vunpack.c.h.b16 %v1943
        %v2122 = vunpack.c.l.b16 %v1944
        %v2123 = vunpack.c.h.b16 %v1944
        %v2124 = vunpack.c.l.b16 %v1945
        %v2125 = vunpack.c.h.b16 %v1945
        %v2126 = vunpack.c.l.b16 %v1946
        %v2127 = vunpack.c.h.b16 %v1946
        %v2128 = vunpack.c.l.b16 %v1947
        %v2129 = vunpack.c.h.b16 %v1947
        %v2130 = vunpack.c.l.b16 %v1948
        %v2131 = vunpack.c.h.b16 %v1948
        %v2132 = vunpack.c.l.b16 %v1949
        %v2133 = vunpack.c.h.b16 %v1949
        %v2134 = vunpack.c.l.b16 %v1950
        %v2135 = vunpack.c.h.b16 %v1950
        %v2136 = vunpack.c.l.b16 %v1951
        %v2137 = vunpack.c.h.b16 %v1951
        %v2138 = vunpack.c.l.b16 %v1952
        %v2139 = vunpack.c.h.b16 %v1952
        %v2140 = vunpack.c.l.b16 %v1953
        %v2141 = vunpack.c.h.b16 %v1953
        %v2142 = vunpack.c.l.b16 %v1954
        %v2143 = vunpack.c.h.b16 %v1954
        %v2144 = vunpack.c.l.b16 %v1955
        %v2145 = vunpack.c.h.b16 %v1955
        %v2146 = vunpack.c.l.b16 %v1956
        %v2147 = vunpack.c.h.b16 %v1956
        %v2148 = vunpack.c.l.b16 %v1957
        %v2149 = vunpack.c.h.b16 %v1957
        %v2150 = vunpack.c.l.b16 %v1958
        %v2151 = vunpack.c.h.b16 %v1958
        %v2152 = vunpack.c.l.b16 %v1959
        %v2153 = vunpack.c.h.b16 %v1959
        %v2154 = vunpack.c.l.b16 %v1960
        %v2155 = vunpack.c.h.b16 %v1960
        %v2156 = vunpack.c.l.b16 %v1961
        %v2157 = vunpack.c.h.b16 %v1961
        %v2158 = vunpack.c.l.b16 %v1962
        %v2159 = vunpack.c.h.b16 %v1962
        %v2160 = vunpack.c.l.b16 %v1963
        %v2161 = vunpack.c.h.b16 %v1963
        %v2162 = vunpack.c.l.b16 %v1964
        %v2163 = vunpack.c.h.b16 %v1964
        %v2164 = vunpack.c.l.b16 %v1965
        %v2165 = vunpack.c.h.b16 %v1965
        %v2166 = vunpack.c.l.b16 %v1966
        %v2167 = vunpack.c.h.b16 %v1966
        %v2168 = vunpack.c.l.b16 %v1967
        %v2169 = vunpack.c.h.b16 %v1967
        %v2170 = vunpack.c.l.b16 %v1968
        %v2171 = vunpack.c.h.b16 %v1968
        %v2172 = vunpack.c.l.b16 %v1969
        %v2173 = vunpack.c.h.b16 %v1969
        %v2174 = vpack.c.b16 %v2048, %v2046
        %v2175 = vpack.c.b16 %v2049, %v2047
        %v2176 = vpack.c.b16 %v2052, %v2050
        %v2177 = vpack.c.b16 %v2053, %v2051
        %v2178 = vpack.c.b16 %v2056, %v2054
        %v2179 = vpack.c.b16 %v2057, %v2055
        %v2180 = vpack.c.b16 %v2060, %v2058
        %v2181 = vpack.c.b16 %v2061, %v2059
        %v2182 = vpack.c.b16 %v2064, %v2062
        %v2183 = vpack.c.b16 %v2065, %v2063
        %v2184 = vpack.c.b16 %v2068, %v2066
        %v2185 = vpack.c.b16 %v2069, %v2067
        %v2186 = vpack.c.b16 %v2072, %v2070
        %v2187 = vpack.c.b16 %v2073, %v2071
        %v2188 = vpack.c.b16 %v2076, %v2074
        %v2189 = vpack.c.b16 %v2077, %v2075
        %v2190 = vpack.c.b16 %v2080, %v2078
        %v2191 = vpack.c.b16 %v2081, %v2079
        %v2192 = vpack.c.b16 %v2084, %v2082
        %v2193 = vpack.c.b16 %v2085, %v2083
        %v2194 = vpack.c.b16 %v2088, %v2086
        %v2195 = vpack.c.b16 %v2089, %v2087
        %v2196 = vpack.c.b16 %v2092, %v2090
        %v2197 = vpack.c.b16 %v2093, %v2091
        %v2198 = vpack.c.b16 %v2096, %v2094
        %v2199 = vpack.c.b16 %v2097, %v2095
        %v2200 = vpack.c.b16 %v2100, %v2098
        %v2201 = vpack.c.b16 %v2101, %v2099
        %v2202 = vpack.c.b16 %v2104, %v2102
        %v2203 = vpack.c.b16 %v2105, %v2103
        %v2204 = vpack.c.b16 %v2108, %v2106
        %v2205 = vpack.c.b16 %v2109, %v2107
        %v2206 = vpack.c.b16 %v2112, %v2110
        %v2207 = vpack.c.b16 %v2113, %v2111
        %v2208 = vpack.c.b16 %v2116, %v2114
        %v2209 = vpack.c.b16 %v2117, %v2115
        %v2210 = vpack.c.b16 %v2120, %v2118
        %v2211 = vpack.c.b16 %v2121, %v2119
        %v2212 = vpack.c.b16 %v2124, %v2122
        %v2213 = vpack.c.b16 %v2125, %v2123
        %v2214 = vpack.c.b16 %v2128, %v2126
        %v2215 = vpack.c.b16 %v2129, %v2127
        %v2216 = vpack.c.b16 %v2132, %v2130
        %v2217 = vpack.c.b16 %v2133, %v2131
        %v2218 = vpack.c.b16 %v2136, %v2134
        %v2219 = vpack.c.b16 %v2137, %v2135
        %v2220 = vpack.c.b16 %v2140, %v2138
        %v2221 = vpack.c.b16 %v2141, %v2139
        %v2222 = vpack.c.b16 %v2144, %v2142
        %v2223 = vpack.c.b16 %v2145, %v2143
        %v2224 = vpack.c.b16 %v2148, %v2146
        %v2225 = vpack.c.b16 %v2149, %v2147
        %v2226 = vpack.c.b16 %v2152, %v2150
        %v2227 = vpack.c.b16 %v2153, %v2151
        %v2228 = vpack.c.b16 %v2156, %v2154
        %v2229 = vpack.c.b16 %v2157, %v2155
        %v2230 = vpack.c.b16 %v2160, %v2158
        %v2231 = vpack.c.b16 %v2161, %v2159
        %v2232 = vpack.c.b16 %v2164, %v2162
        %v2233 = vpack.c.b16 %v2165, %v2163
        %v2234 = vpack.c.b16 %v2168, %v2166
        %v2235 = vpack.c.b16 %v2169, %v2167
        %v2236 = vpack.c.b16 %v2172, %v2170
        %v2237 = vpack.c.b16 %v2173, %v2171
        %2302 = vmatprep.subr.bf16.mxu0 %v2189
        %2303 = vmatpush1.bf16.msra.mxu0 %v2188
        %2304 = vmatprep.subr.bf16.mxu0 %v2187
        %2305 = vmatpush1.bf16.msra.mxu0 %v2186
        %2306 = vmatprep.subr.bf16.mxu0 %v2185
        %2307 = vmatpush1.bf16.msra.mxu0 %v2184
        %2308 = vmatprep.subr.bf16.mxu0 %v2183
        %2309 = vmatpush1.bf16.msra.mxu0 %v2182
        %2310 = vmatprep.subr.bf16.mxu0 %v2181
        %2311 = vmatpush1.bf16.msra.mxu0 %v2180
        %2312 = vmatprep.subr.bf16.mxu0 %v2179
        %2313 = vmatpush1.bf16.msra.mxu0 %v2178
        %2314 = vmatprep.subr.bf16.mxu0 %v2177
        %2315 = vmatpush1.bf16.msra.mxu0 %v2176
        %2316 = vmatprep.subr.bf16.mxu0 %v2175
        %2317 = vmatpush1.bf16.msra.mxu0 %v2174
        %2318 = vmatprep.subr.bf16.mxu0 %v2205
        %2319 = vmatpush2.bf16.msra.mxu0 %v2204
        %2320 = vmatprep.subr.bf16.mxu0 %v2203
        %2321 = vmatpush2.bf16.msra.mxu0 %v2202
        %2322 = vmatprep.subr.bf16.mxu0 %v2201
        %2323 = vmatpush2.bf16.msra.mxu0 %v2200
        %2324 = vmatprep.subr.bf16.mxu0 %v2199
        %2325 = vmatpush2.bf16.msra.mxu0 %v2198
        %2326 = vmatprep.subr.bf16.mxu0 %v2197
        %2327 = vmatpush2.bf16.msra.mxu0 %v2196
        %2328 = vmatprep.subr.bf16.mxu0 %v2195
        %2329 = vmatpush2.bf16.msra.mxu0 %v2194
        %2330 = vmatprep.subr.bf16.mxu0 %v2193
        %2331 = vmatpush2.bf16.msra.mxu0 %v2192
        %2332 = vmatprep.subr.bf16.mxu0 %v2191
        %2333 = vmatpush2.bf16.msra.mxu0 %v2190
        %2334 = vmatprep.mubr.bf16.mxu0 %v1903
        %2335 = vmatmul.mubr.bf16.gmra.mxu0 %v1902
        %v2336 = vpop.f32.mrf.mxu0
        %v2337 = vadd.f32 %v1975, %v2336
        %v2338 = vpop.f32.mrf.mxu0
        %v2339 = vadd.f32 %v1979, %v2338
        %v2340 = vpop.f32.mrf.mxu0
        %v2341 = vadd.f32 %v1975, %v2340
        %v2342 = vpop.f32.mrf.mxu0
        %v2343 = vadd.f32 %v1979, %v2342
        %2344 = vdwg.mxu0
        %2345 = vmatprep.subr.bf16.mxu0 %v2221
        %2346 = vmatpush1.bf16.msra.mxu0 %v2220
        %2347 = vmatprep.subr.bf16.mxu0 %v2219
        %2348 = vmatpush1.bf16.msra.mxu0 %v2218
        %2349 = vmatprep.subr.bf16.mxu0 %v2217
        %2350 = vmatpush1.bf16.msra.mxu0 %v2216
        %2351 = vmatprep.subr.bf16.mxu0 %v2215
        %2352 = vmatpush1.bf16.msra.mxu0 %v2214
        %2353 = vmatprep.subr.bf16.mxu0 %v2213
        %2354 = vmatpush1.bf16.msra.mxu0 %v2212
        %2355 = vmatprep.subr.bf16.mxu0 %v2211
        %2356 = vmatpush1.bf16.msra.mxu0 %v2210
        %2357 = vmatprep.subr.bf16.mxu0 %v2209
        %2358 = vmatpush1.bf16.msra.mxu0 %v2208
        %2359 = vmatprep.subr.bf16.mxu0 %v2207
        %2360 = vmatpush1.bf16.msra.mxu0 %v2206
        %2361 = vmatprep.subr.bf16.mxu0 %v2237
        %2362 = vmatpush2.bf16.msra.mxu0 %v2236
        %2363 = vmatprep.subr.bf16.mxu0 %v2235
        %2364 = vmatpush2.bf16.msra.mxu0 %v2234
        %2365 = vmatprep.subr.bf16.mxu0 %v2233
        %2366 = vmatpush2.bf16.msra.mxu0 %v2232
        %2367 = vmatprep.subr.bf16.mxu0 %v2231
        %2368 = vmatpush2.bf16.msra.mxu0 %v2230
        %2369 = vmatprep.subr.bf16.mxu0 %v2229
        %2370 = vmatpush2.bf16.msra.mxu0 %v2228
        %2371 = vmatprep.subr.bf16.mxu0 %v2227
        %2372 = vmatpush2.bf16.msra.mxu0 %v2226
        %2373 = vmatprep.subr.bf16.mxu0 %v2225
        %2374 = vmatpush2.bf16.msra.mxu0 %v2224
        %2375 = vmatprep.subr.bf16.mxu0 %v2223
        %2376 = vmatpush2.bf16.msra.mxu0 %v2222
        %2377 = vmatprep.mubr.bf16.mxu0 %v1905
        %2378 = vmatmul.mubr.bf16.gmra.mxu0 %v1904
        %v2379 = vpop.f32.mrf.mxu0
        %v2380 = vadd.f32 %v2337, %v2379
        %v2381 = vpop.f32.mrf.mxu0
        %v2382 = vadd.f32 %v2339, %v2381
        %v2383 = vpop.f32.mrf.mxu0
        %v2384 = vadd.f32 %v2341, %v2383
        %v2385 = vpop.f32.mrf.mxu0
        %v2386 = vadd.f32 %v2343, %v2385
        %2387 = vdwg.mxu0
        %vm2388 = vcmp.gt.f32.partialorder %v2380, 0.0
        %vm2389 = vcmp.gt.f32.partialorder %v2382, 0.0
        %vm2390 = vcmp.gt.f32.partialorder %v2384, 0.0
        %vm2391 = vcmp.gt.f32.partialorder %v2386, 0.0
        %v2392 = vmul.f32 %v2380, 0.2
        %v2393 = vmul.f32 %v2382, 0.2
        %v2394 = vmul.f32 %v2384, 0.2
        %v2395 = vmul.f32 %v2386, 0.2
        %v2396 = vsel %vm2388, %v2380, %v2392
        %v2397 = vsel %vm2389, %v2382, %v2393
        %v2398 = vsel %vm2390, %v2384, %v2394
        %v2399 = vsel %vm2391, %v2386, %v2395
        %v2400 = vpack.c.bf16 %v2398, %v2396
        %v2401 = vpack.c.bf16 %v2399, %v2397
        %v2402 = vld [vmem:[%s5] sm:$0xf]
        %v2403 = vld [vmem:[%s5 + $0x4] sm:$0xf]
        %v2404 = vld [vmem:[%s5 + $0x8] sm:$0xf]
        %v2405 = vld [vmem:[%s5 + $0xc] sm:$0xf]
        %v2406 = vld [vmem:[%s5 + $0x10] sm:$0xf]
        %v2407 = vld [vmem:[%s5 + $0x14] sm:$0xf]
        %v2408 = vld [vmem:[%s5 + $0x18] sm:$0xf]
        %v2409 = vld [vmem:[%s5 + $0x1c] sm:$0xf]
        %v2410 = vld [vmem:[%s5 + $0x20] sm:$0xf]
        %v2411 = vld [vmem:[%s5 + $0x24] sm:$0xf]
        %v2412 = vld [vmem:[%s5 + $0x28] sm:$0xf]
        %v2413 = vld [vmem:[%s5 + $0x2c] sm:$0xf]
        %v2414 = vld [vmem:[%s5 + $0x30] sm:$0xf]
        %v2415 = vld [vmem:[%s5 + $0x34] sm:$0xf]
        %v2416 = vld [vmem:[%s5 + $0x38] sm:$0xf]
        %v2417 = vld [vmem:[%s5 + $0x3c] sm:$0xf]
        %v2418 = vld [vmem:[%s5 + $0x40] sm:$0xf]
        %v2419 = vld [vmem:[%s5 + $0x44] sm:$0xf]
        %v2420 = vld [vmem:[%s5 + $0x48] sm:$0xf]
        %v2421 = vld [vmem:[%s5 + $0x4c] sm:$0xf]
        %v2422 = vld [vmem:[%s5 + $0x50] sm:$0xf]
        %v2423 = vld [vmem:[%s5 + $0x54] sm:$0xf]
        %v2424 = vld [vmem:[%s5 + $0x58] sm:$0xf]
        %v2425 = vld [vmem:[%s5 + $0x5c] sm:$0xf]
        %v2426 = vld [vmem:[%s5 + $0x60] sm:$0xf]
        %v2427 = vld [vmem:[%s5 + $0x64] sm:$0xf]
        %v2428 = vld [vmem:[%s5 + $0x68] sm:$0xf]
        %v2429 = vld [vmem:[%s5 + $0x6c] sm:$0xf]
        %v2430 = vld [vmem:[%s5 + $0x70] sm:$0xf]
        %v2431 = vld [vmem:[%s5 + $0x74] sm:$0xf]
        %v2432 = vld [vmem:[%s5 + $0x78] sm:$0xf]
        %v2433 = vld [vmem:[%s5 + $0x7c] sm:$0xf]
        %v2466 = vunpack.c.l.b16 %v2402
        %v2467 = vunpack.c.l.b16 %v2403
        %v2468 = vunpack.c.l.b16 %v2404
        %v2469 = vunpack.c.l.b16 %v2405
        %v2470 = vunpack.c.l.b16 %v2406
        %v2471 = vunpack.c.l.b16 %v2407
        %v2472 = vunpack.c.l.b16 %v2408
        %v2473 = vunpack.c.l.b16 %v2409
        %v2474 = vunpack.c.l.b16 %v2410
        %v2475 = vunpack.c.l.b16 %v2411
        %v2476 = vunpack.c.l.b16 %v2412
        %v2477 = vunpack.c.l.b16 %v2413
        %v2478 = vunpack.c.l.b16 %v2414
        %v2479 = vunpack.c.l.b16 %v2415
        %v2480 = vunpack.c.l.b16 %v2416
        %v2481 = vunpack.c.l.b16 %v2417
        %v2482 = vunpack.c.l.b16 %v2418
        %v2483 = vunpack.c.l.b16 %v2419
        %v2484 = vunpack.c.l.b16 %v2420
        %v2485 = vunpack.c.l.b16 %v2421
        %v2486 = vunpack.c.l.b16 %v2422
        %v2487 = vunpack.c.l.b16 %v2423
        %v2488 = vunpack.c.l.b16 %v2424
        %v2489 = vunpack.c.l.b16 %v2425
        %v2490 = vunpack.c.l.b16 %v2426
        %v2491 = vunpack.c.l.b16 %v2427
        %v2492 = vunpack.c.l.b16 %v2428
        %v2493 = vunpack.c.l.b16 %v2429
        %v2494 = vunpack.c.l.b16 %v2430
        %v2495 = vunpack.c.l.b16 %v2431
        %v2496 = vunpack.c.l.b16 %v2432
        %v2497 = vunpack.c.l.b16 %v2433
        %v2498 = vpack.c.b16 %v2467, %v2466
        %v2499 = vpack.c.b16 %v2469, %v2468
        %v2500 = vpack.c.b16 %v2471, %v2470
        %v2501 = vpack.c.b16 %v2473, %v2472
        %v2502 = vpack.c.b16 %v2475, %v2474
        %v2503 = vpack.c.b16 %v2477, %v2476
        %v2504 = vpack.c.b16 %v2479, %v2478
        %v2505 = vpack.c.b16 %v2481, %v2480
        %v2506 = vpack.c.b16 %v2483, %v2482
        %v2507 = vpack.c.b16 %v2485, %v2484
        %v2508 = vpack.c.b16 %v2487, %v2486
        %v2509 = vpack.c.b16 %v2489, %v2488
        %v2510 = vpack.c.b16 %v2491, %v2490
        %v2511 = vpack.c.b16 %v2493, %v2492
        %v2512 = vpack.c.b16 %v2495, %v2494
        %v2513 = vpack.c.b16 %v2497, %v2496
        %2530 = vmatprep.subr.bf16.mxu0 0
        %2531 = vmatpush1.bf16.msra.mxu0 %v2505
        %2532 = vmatprep.subr.bf16.mxu0 0
        %2533 = vmatpush1.bf16.msra.mxu0 %v2504
        %2534 = vmatprep.subr.bf16.mxu0 0
        %2535 = vmatpush1.bf16.msra.mxu0 %v2503
        %2536 = vmatprep.subr.bf16.mxu0 0
        %2537 = vmatpush1.bf16.msra.mxu0 %v2502
        %2538 = vmatprep.subr.bf16.mxu0 0
        %2539 = vmatpush1.bf16.msra.mxu0 %v2501
        %2540 = vmatprep.subr.bf16.mxu0 0
        %2541 = vmatpush1.bf16.msra.mxu0 %v2500
        %2542 = vmatprep.subr.bf16.mxu0 0
        %2543 = vmatpush1.bf16.msra.mxu0 %v2499
        %2544 = vmatprep.subr.bf16.mxu0 0
        %2545 = vmatpush1.bf16.msra.mxu0 %v2498
        %2546 = vmatprep.subr.bf16.mxu0 0
        %2547 = vmatpush2.bf16.msra.mxu0 %v2513
        %2548 = vmatprep.subr.bf16.mxu0 0
        %2549 = vmatpush2.bf16.msra.mxu0 %v2512
        %2550 = vmatprep.subr.bf16.mxu0 0
        %2551 = vmatpush2.bf16.msra.mxu0 %v2511
        %2552 = vmatprep.subr.bf16.mxu0 0
        %2553 = vmatpush2.bf16.msra.mxu0 %v2510
        %2554 = vmatprep.subr.bf16.mxu0 0
        %2555 = vmatpush2.bf16.msra.mxu0 %v2509
        %2556 = vmatprep.subr.bf16.mxu0 0
        %2557 = vmatpush2.bf16.msra.mxu0 %v2508
        %2558 = vmatprep.subr.bf16.mxu0 0
        %2559 = vmatpush2.bf16.msra.mxu0 %v2507
        %2560 = vmatprep.subr.bf16.mxu0 0
        %2561 = vmatpush2.bf16.msra.mxu0 %v2506
        %2562 = vmatprep.mubr.bf16.mxu0 %v2401
        %2563 = vmatmul.mubr.bf16.gmra.mxu0 %v2400
        %v2564 = vpop.f32.mrf.mxu0
        %v2565 = vadd.f32 0.0, %v2564
        %v2566 = vpop.f32.mrf.mxu0
        %v2567 = vpop.f32.mrf.mxu0
        %v2568 = vadd.f32 0.0, %v2567
        %v2569 = vpop.f32.mrf.mxu0
        %2570 = vdwg.mxu0
        %v2571 = vld [vmem:[#allocation2] sm:$0x1]
        %v2573 = vlaneseq
        %v2574 = vshrl.u32 %v2573, 7
        %v2575 = vsub.s32 0, %v2574
        %v2576 = vrot.slane %v2571, %v2575
        %v2578 = vadd.f32 %v2565, %v2576
        %v2579 = vadd.f32 %v2568, %v2576
        %v2580 = vxor.u32 %v2578, 2147483648
        %v2581 = vxor.u32 %v2579, 2147483648
        %v2582 = vmul.f32 %v2580, 1.442695
        %v2583 = vpow.pop %v2582
        %v2584 = vmul.f32 %v2581, 1.442695
        %v2585 = vpow.pop %v2584
        %v2586 = vadd.f32 %v2583, 1.0
        %v2587 = vadd.f32 %v2585, 1.0
        %v2588 = vrcp.pop %v2586
        %v2589 = vmul.f32 1.0, %v2588
        %v2590 = vrcp.pop %v2587
        %v2591 = vmul.f32 1.0, %v2590
        %vm2592 = vcmask 7168
        %2593 = vst.msk [vmem:[%s287] sm:$0xff] %vm2592, %v2589
        %2594 = vst.msk [vmem:[%s287 + $0x8] sm:$0xff] %vm2592, %v2591
        %s2595 = sand.u32 %s180, 1
        %s2596 = sand.u32 %s180, 1
        %s2597 = smul.addr %s2596, 16
        %s2598 = scalar_lea.vmem [#allocation3], %s2597
        // Predicated region
        $region49: #{discriminator_forward.1} parent=47 // pred_check
          %p2599 = pneg %p190
        $region50: #{discriminator_forward.1} parent=47 // pred_check_branch
          %2601 = sbr.rel (%p2599) target = $region52
        $region51: #{discriminator_forward.1} parent=47 // pred_region
          %s2602 = smul.u32 2, %s20
          %s2603 = ssub.s32 3, %s2602
          %p2604 = scmp.lt.s32.totalorder %s2603, 2
          %s2605 = scalar_select %p2604, %s2603, 2
          %s2606 = smul.u32 128, %s2605
          %p2607 = scmp.ne.s32.totalorder 0, %s2606
          %s2608 = smul.addr %s2602, 8
          %s2609 = scalar_lea.vmem %s7, %s2608
          // Predicated region
          $region53: #{discriminator_forward.1} parent=51 // pred_check
            %p2610 = pneg %p2607
          $region54: #{discriminator_forward.1} parent=51 // pred_check_branch
            %2612 = sbr.rel (%p2610) target = $region56
          $region55: #{discriminator_forward.1} parent=51 // pred_region
            // Predicated region
            $region57: #{discriminator_forward.1} parent=55 // pred_check
              _
            $region58: #{discriminator_forward.1} parent=55 // pred_check_branch
              %2614 = sbr.rel (0) target = $region60
            $region59: #{discriminator_forward.1} parent=55 // pred_region
              // Predicated region
              $region79: #{discriminator_forward.1} parent=59 // pred_check
                _
              $region80: #{discriminator_forward.1} parent=59 // pred_check_branch
                %2666 = sbr.rel (0) target = $region82
              $region81: #{discriminator_forward.1} parent=59 // pred_region
                %s2667 = sshrl.u32 %s2605, 1
                // While loop
                $region83: #{discriminator_forward.1} parent=81 // loop_pre_header
                  _
                $region84: #{discriminator_forward.1} parent=81 // loop_header
                  %s2669 = sphi 0, %s2671
                  %p2670 = scmp.ge.s32.totalorder %s2669, %s2667
                  %s2674 = sphi 0, %s2683
                  %s2675 = sphi %s2598, %s2686
                  %s2676 = sphi %s2609, %s2687
                $region85: #{discriminator_forward.1} parent=81 // loop_header_branch
                  %2673 = sbr.rel (%p2670) target = $region89
                $region86: #{discriminator_forward.1} parent=81 // loop_body
                  %v2677 = vld [vmem:[%s2675] sm:$0xff]
                  %2678 = vst [vmem:[%s2676] sm:$0xff] %v2677
                  %v2679 = vld [vmem:[%s2675 + $0x8] sm:$0xff]
                  %2680 = vst [vmem:[%s2676 + $0x8] sm:$0xff] %v2679
                  %s2681 = sadd.s32 1, %s2674
                  %p2682 = scmp.ge.s32.totalorder %s2681, %s2667
                  %s2683 = scalar_select %p2682, 0, %s2681
                  %s2684 = smul.u32 %s2683, 16
                  %s2685 = smul.u32 %s2683, 16
                  %s2686 = scalar_lea.vmem %s2598, %s2684 [#allocation3]
                  %s2687 = scalar_lea.vmem %s2609, %s2685
                $region87: #{discriminator_forward.1} parent=81 // loop_footer
                  %s2671 = sadd.s32 %s2669, 1
                $region88: #{discriminator_forward.1} parent=81 // loop_footer_branch
                  %2668 = sbr.rel target = $region84
                $region89: #{discriminator_forward.1} parent=81 // loop_exit
                  _
                %s2688 = sshrl.u32 %s2605, 1
                %s2689 = sand.u32 %s2605, 1
                %s2690 = smul.u32 %s2688, 2
                %s2691 = smul.u32 8, %s2690
                %s2692 = scalar_lea.vmem %s2598, %s2691 [#allocation3]
                %s2693 = smul.u32 8, %s2690
                %s2694 = scalar_lea.vmem %s2609, %s2693
                // While loop
                $region90: #{discriminator_forward.1} parent=81 // loop_pre_header
                  _
                $region91: #{discriminator_forward.1} parent=81 // loop_header
                  %s2696 = sphi 0, %s2698
                  %p2697 = scmp.ge.s32.totalorder %s2696, %s2689
                  %s2701 = sphi 0, %s2708
                  %s2702 = sphi %s2692, %s2711
                  %s2703 = sphi %s2694, %s2712
                $region92: #{discriminator_forward.1} parent=81 // loop_header_branch
                  %2700 = sbr.rel (%p2697) target = $region96
                $region93: #{discriminator_forward.1} parent=81 // loop_body
                  %v2704 = vld [vmem:[%s2702] sm:$0xff]
                  %2705 = vst [vmem:[%s2703] sm:$0xff] %v2704
                  %s2706 = sadd.s32 1, %s2701
                  %p2707 = scmp.ge.s32.totalorder %s2706, %s2689
                  %s2708 = scalar_select %p2707, 0, %s2706
                  %s2709 = smul.u32 %s2708, 8
                  %s2710 = smul.u32 %s2708, 8
                  %s2711 = scalar_lea.vmem %s2692, %s2709 [#allocation3]
                  %s2712 = scalar_lea.vmem %s2694, %s2710
                $region94: #{discriminator_forward.1} parent=81 // loop_footer
                  %s2698 = sadd.s32 %s2696, 1
                $region95: #{discriminator_forward.1} parent=81 // loop_footer_branch
                  %2695 = sbr.rel target = $region91
                $region96: #{discriminator_forward.1} parent=81 // loop_exit
                  _
              $region82: #{discriminator_forward.1} parent=59 // pred_fallthru
                _
              // Predicated region
              $region97: #{discriminator_forward.1} parent=59 // pred_check
                _
              $region98: #{discriminator_forward.1} parent=59 // pred_check_branch
                %2714 = sbr.rel target = $region100
              $region99: #{discriminator_forward.1} parent=59 // pred_region
                _
              $region100: #{discriminator_forward.1} parent=59 // pred_fallthru
                _
            $region60: #{discriminator_forward.1} parent=55 // pred_fallthru
              _
            // Predicated region
            $region61: #{discriminator_forward.1} parent=55 // pred_check
              _
            $region62: #{discriminator_forward.1} parent=55 // pred_check_branch
              %2616 = sbr.rel target = $region64
            $region63: #{discriminator_forward.1} parent=55 // pred_region
              %s2618 = ssub.s32 256, 1
              %s2619 = sshrl.u32 %s2605, 1
              // While loop
              $region65: #{discriminator_forward.1} parent=63 // loop_pre_header
                _
              $region66: #{discriminator_forward.1} parent=63 // loop_header
                %s2621 = sphi 0, %s2623
                %p2622 = scmp.ge.s32.totalorder %s2621, %s2619
                %s2626 = sphi 0, %s2635
                %s2627 = sphi %s2598, %s2638
                %s2628 = sphi %s2609, %s2639
              $region67: #{discriminator_forward.1} parent=63 // loop_header_branch
                %2625 = sbr.rel (%p2622) target = $region71
              $region68: #{discriminator_forward.1} parent=63 // loop_body
                %v2629 = vld [vmem:[%s2627] sm:%s2618]
                %2630 = vst [vmem:[%s2628] sm:%s2618] %v2629
                %v2631 = vld [vmem:[%s2627 + $0x8] sm:%s2618]
                %2632 = vst [vmem:[%s2628 + $0x8] sm:%s2618] %v2631
                %s2633 = sadd.s32 1, %s2626
                %p2634 = scmp.ge.s32.totalorder %s2633, %s2619
                %s2635 = scalar_select %p2634, 0, %s2633
                %s2636 = smul.u32 %s2635, 16
                %s2637 = smul.u32 %s2635, 16
                %s2638 = scalar_lea.vmem %s2598, %s2636 [#allocation3]
                %s2639 = scalar_lea.vmem %s2609, %s2637
              $region69: #{discriminator_forward.1} parent=63 // loop_footer
                %s2623 = sadd.s32 %s2621, 1
              $region70: #{discriminator_forward.1} parent=63 // loop_footer_branch
                %2620 = sbr.rel target = $region66
              $region71: #{discriminator_forward.1} parent=63 // loop_exit
                _
              %s2640 = sshrl.u32 %s2605, 1
              %s2641 = sand.u32 %s2605, 1
              %s2642 = smul.u32 %s2640, 2
              %s2643 = smul.u32 8, %s2642
              %s2644 = scalar_lea.vmem %s2598, %s2643 [#allocation3]
              %s2645 = smul.u32 8, %s2642
              %s2646 = scalar_lea.vmem %s2609, %s2645
              // While loop
              $region72: #{discriminator_forward.1} parent=63 // loop_pre_header
                _
              $region73: #{discriminator_forward.1} parent=63 // loop_header
                %s2648 = sphi 0, %s2650
                %p2649 = scmp.ge.s32.totalorder %s2648, %s2641
                %s2653 = sphi 0, %s2660
                %s2654 = sphi %s2644, %s2663
                %s2655 = sphi %s2646, %s2664
              $region74: #{discriminator_forward.1} parent=63 // loop_header_branch
                %2652 = sbr.rel (%p2649) target = $region78
              $region75: #{discriminator_forward.1} parent=63 // loop_body
                %v2656 = vld [vmem:[%s2654] sm:%s2618]
                %2657 = vst [vmem:[%s2655] sm:%s2618] %v2656
                %s2658 = sadd.s32 1, %s2653
                %p2659 = scmp.ge.s32.totalorder %s2658, %s2641
                %s2660 = scalar_select %p2659, 0, %s2658
                %s2661 = smul.u32 %s2660, 8
                %s2662 = smul.u32 %s2660, 8
                %s2663 = scalar_lea.vmem %s2644, %s2661 [#allocation3]
                %s2664 = scalar_lea.vmem %s2646, %s2662
              $region76: #{discriminator_forward.1} parent=63 // loop_footer
                %s2650 = sadd.s32 %s2648, 1
              $region77: #{discriminator_forward.1} parent=63 // loop_footer_branch
                %2647 = sbr.rel target = $region73
              $region78: #{discriminator_forward.1} parent=63 // loop_exit
                _
            $region64: #{discriminator_forward.1} parent=55 // pred_fallthru
              _
          $region56: #{discriminator_forward.1} parent=51 // pred_fallthru
            _
          %2715 = vnop
        $region52: #{discriminator_forward.1} parent=47 // pred_fallthru
          _
      $region48: #{discriminator_forward.1} parent=5 // pred_fallthru
        _
      %p2716 = scmp.le.s32.totalorder 2, %s15
      // Predicated region
      $region101: #{discriminator_forward.1} parent=5 // pred_check
        %p2717 = pneg %p2716
      $region102: #{discriminator_forward.1} parent=5 // pred_check_branch
        %2719 = sbr.rel (%p2717) target = $region104
      $region103: #{discriminator_forward.1} parent=5 // pred_region
        %s2720 = ssub.s32 %s15, 2
        // Predicated region
        $region105: #{discriminator_forward.1} parent=103 // pred_check
          %p2721 = pneg %p196
        $region106: #{discriminator_forward.1} parent=103 // pred_check_branch
          %2723 = sbr.rel (%p2721) target = $region108
        $region107: #{discriminator_forward.1} parent=103 // pred_region
          %s2724 = sand.u32 %s181, 1
          %s2725 = sand.u32 %s181, 1
          %s2726 = smul.addr %s2725, 16
          %s2727 = scalar_lea.vmem [#allocation3], %s2726
        $region108: #{discriminator_forward.1} parent=103 // pred_fallthru
          _
      $region104: #{discriminator_forward.1} parent=5 // pred_fallthru
        _
    $region6: #{discriminator_forward.1} parent=1 // loop_footer
      %s19 = sadd.s32 1, %s15
    $region7: #{discriminator_forward.1} parent=1 // loop_footer_branch
      %14 = sbr.rel target = $region3
    $region8: #{discriminator_forward.1} parent=1 // loop_exit
      _

</llo_original>
